<compile_context>
chip_gen: v6e
topology: v6e:2x2x1
jax: 0.10.0
libtpu: 0.0.40
codegen_flags: <defaults>
</compile_context>

<pallas_src>
import jax
import jax.numpy as jnp
from jax import lax
from jax.experimental import pallas as pl
from jax.experimental.pallas import tpu as pltpu

HID = 128  # hidden width of both heads


def _make_kernel(n_feat_parts, split_heads):
    """Build the kernel.

    n_feat_parts: 1 if aud_feat is None, else 2 (matmul split along K).
    split_heads : False -> one grid block computes both heads (v5e/v6e).
                  True  -> grid block j computes head j only (v7x, one head per TensorCore);
                           the weight / slab / output BlockSpecs already select that head's
                           128-column half.
    """

    def kernel(*refs):
        feat_refs = refs[:n_feat_parts]
        w_refs = refs[n_feat_parts:2 * n_feat_parts]
        slab_ref = refs[2 * n_feat_parts]
        out_ref = refs[2 * n_feat_parts + 1]

        eps = jnp.float32(1e-5)
        nc = out_ref.shape[2]  # static

        # Fused [folded v-head | a-head Linear1] projection, split along K across the
        # feature inputs so `feat` is never concatenated. Weights stay bf16 (native MXU
        # path); the small activation block is cast to bf16; accumulation is f32.
        acc = None
        for f_ref, w_ref in zip(feat_refs, w_refs):
            part = jnp.dot(f_ref[...].astype(jnp.bfloat16), w_ref[...],
                           preferred_element_type=jnp.float32)
            acc = part if acc is None else acc + part
        pre = acc + slab_ref[0:1, :]                     # + packed bias row

        def batchnorm(h, g, beta):
            mu = jnp.mean(h, axis=0, keepdims=True)
            var = jnp.mean((h - mu) ** 2, axis=0, keepdims=True)   # biased variance
            return (h - mu) * lax.rsqrt(var + eps) * g + beta

        def project(h, w2, b2):
            if nc == 1:
                # 1-column projection on the VPU/XLU (a 1-wide MXU matmul is ~0.4% utilized).
                return jnp.sum(h * w2, axis=-1, keepdims=True) + b2
            return lax.dot_general(h, w2, (((1,), (1,)), ((), ())),
                                   preferred_element_type=jnp.float32) + b2

        if split_heads:
            # Head j == grid block j: 0 = v-head (LeakyReLU), 1 = a-head (no activation).
            slope = jnp.where(pl.program_id(0) == 0, jnp.float32(0.1), jnp.float32(1.0))
            h = jnp.where(pre >= 0, pre, slope * pre)
            h = batchnorm(h, slab_ref[1:2, :], slab_ref[2:3, :])
            o = project(h, slab_ref[3:3 + nc, :], slab_ref[3 + nc:4 + nc, 0:nc])
            out_ref[0, :, :] = o
            out_ref[1, :, :] = jnp.tanh(o)
        else:
            hv = pre[:, :HID]   # == feat_fc(feat) @ Wv1.T + bias (folded, exact)
            ha = pre[:, HID:]   # == ahead Linear(C, 128)

            hv = jnp.where(hv >= 0, hv, jnp.float32(0.1) * hv)     # LeakyReLU(0.1)
            hv = batchnorm(hv, slab_ref[1:2, :HID], slab_ref[2:3, :HID])
            ha = batchnorm(ha, slab_ref[1:2, HID:], slab_ref[2:3, HID:])

            vout = project(hv, slab_ref[3:3 + nc, :HID],
                           slab_ref[3 + nc:4 + nc, 0:nc])
            aout = project(ha, slab_ref[3:3 + nc, HID:],
                           slab_ref[3 + nc:4 + nc, HID:HID + nc])

            # Single packed output (row order: vout, vtanh, aout, atanh) -> one write-back DMA.
            out_ref[0, :, :] = vout
            out_ref[1, :, :] = jnp.tanh(vout)
            out_ref[2, :, :] = aout
            out_ref[3, :, :] = jnp.tanh(aout)

    return kernel


def _default_head_blocks():
    # v7x has two TensorCores per chip: split the independent heads across them.
    # On single-TC v5e/v6e an extra grid step is pure overhead, so keep one block.
    try:
        kind = jax.devices()[0].device_kind.lower()
    except Exception:
        return 1
    return 2 if "v7" in kind else 1


def mlp_forward(vis_feat, aud_feat, packed, head_blocks=None):
    feats = (vis_feat,) if aud_feat is None else (vis_feat, aud_feat)
    w_parts = packed["w_parts"]
    assert len(w_parts) == len(feats), "packed params do not match the feature inputs"
    for f, w in zip(feats, w_parts):
        assert f.shape[1] == w.shape[0]

    n = vis_feat.shape[0]
    nc = packed["num_classes"]
    slab = packed["slab"]

    if head_blocks is None:
        head_blocks = _default_head_blocks()
    split = head_blocks == 2

    inputs = feats + tuple(w_parts) + (slab,)

    feat_specs = [pl.BlockSpec(f.shape, lambda j: (0, 0)) for f in feats]
    if split:
        # Block j streams only head j's 128-column weight/param half and writes its
        # contiguous (2, N, nc) output slab.
        w_specs = [pl.BlockSpec((w.shape[0], HID), lambda j: (0, j)) for w in w_parts]
        slab_spec = pl.BlockSpec((slab.shape[0], HID), lambda j: (0, j))
        out_spec = pl.BlockSpec((2, n, nc), lambda j: (j, 0, 0))
        semantics = ("parallel",)
    else:
        w_specs = [pl.BlockSpec(w.shape, lambda j: (0, 0)) for w in w_parts]
        slab_spec = pl.BlockSpec(slab.shape, lambda j: (0, 0))
        out_spec = pl.BlockSpec((4, n, nc), lambda j: (0, 0, 0))
        semantics = ("arbitrary",)

    out = pl.pallas_call(
        _make_kernel(len(feats), split),
        grid=(head_blocks,),
        in_specs=feat_specs + w_specs + [slab_spec],
        out_specs=out_spec,
        out_shape=jax.ShapeDtypeStruct((4, n, nc), jnp.float32),
        compiler_params=pltpu.CompilerParams(
            dimension_semantics=semantics,
            vmem_limit_bytes=32 << 20,   # headroom under v7x's 64 MiB physical VMEM
        ),
    )(*inputs)
    # Packed row order is (vout, vtanh, aout, atanh); module returns (vout, aout, vtanh, atanh).
    return out[0], out[2], out[1], out[3]


def init_params(key, concat_dim=2176, num_classes=1):
    """Raw parameters in the PyTorch layouts."""
    ks = jax.random.split(key, 10)

    def w(k, shape, scale=0.02):
        return (scale * jax.random.normal(k, shape)).astype(jnp.float32)

    return dict(
        # Conv1d(concat_dim, 512, 1): weight (512, concat_dim, 1) with the kernel dim squeezed.
        wfc=w(ks[0], (512, concat_dim)), bfc=w(ks[1], (512,)),
        # vhead
        wv1=w(ks[2], (128, 512)), bv1=w(ks[3], (128,)),
        gv=jnp.ones((128,), jnp.float32), betav=jnp.zeros((128,), jnp.float32),
        wv2=w(ks[4], (num_classes, 128)), bv2=w(ks[5], (num_classes,)),
        # ahead
        wa1=w(ks[6], (128, concat_dim)), ba1=w(ks[7], (128,)),
        ga=jnp.ones((128,), jnp.float32), betaa=jnp.zeros((128,), jnp.float32),
        wa2=w(ks[8], (num_classes, 128)), ba2=w(ks[9], (num_classes,)),
    )


def pack_params(raw, feat_dims, weight_dtype=jnp.bfloat16):
    """Fold + fuse + cast parameters for the kernel (done once, offline).

    feat_dims: per-feature-input channel widths, e.g. (1408, 768); sum == concat_dim.
    """
    nc = raw["wv2"].shape[0]

    # Exact fold of feat_fc (C->512) with vhead Linear(512->128): no nonlinearity between.
    w_fold = raw["wfc"].T @ raw["wv1"].T                        # (C, 128)
    b_fold = raw["bfc"] @ raw["wv1"].T + raw["bv1"]             # (128,)

    # Pack [folded v-head | a-head Linear1] column-wise into one lane-dense RHS; split along
    # K per feature input; streamed weights stored in bf16.
    w_big = jnp.concatenate([w_fold, raw["wa1"].T], axis=1)     # (C, 256)
    assert w_big.shape[0] == sum(feat_dims)
    parts, off = [], 0
    for d in feat_dims:
        parts.append(w_big[off:off + d].astype(weight_dtype))
        off += d

    # Small-parameter slab: one f32 (rows_pad, 256) array -> a single prologue DMA.
    # Left 128 lanes = v-head params, right 128 lanes = a-head params:
    #   row 0        : folded v bias           | ahead Linear1 bias
    #   row 1        : BN gamma (v)            | BN gamma (a)
    #   row 2        : BN beta  (v)            | BN beta  (a)
    #   rows 3..2+nc : Linear2 weight rows (v) | Linear2 weight rows (a)
    #   row 3+nc     : Linear2 bias (v, padded)| Linear2 bias (a, padded)
    rows_pad = ((4 + nc + 7) // 8) * 8
    f32 = lambda x: jnp.asarray(x, jnp.float32)
    slab = jnp.zeros((rows_pad, 2 * HID), jnp.float32)
    slab = slab.at[0, 0:HID].set(f32(b_fold))
    slab = slab.at[0, HID:2 * HID].set(f32(raw["ba1"]))
    slab = slab.at[1, 0:HID].set(f32(raw["gv"]))
    slab = slab.at[1, HID:2 * HID].set(f32(raw["ga"]))
    slab = slab.at[2, 0:HID].set(f32(raw["betav"]))
    slab = slab.at[2, HID:2 * HID].set(f32(raw["betaa"]))
    slab = slab.at[3:3 + nc, 0:HID].set(f32(raw["wv2"]))
    slab = slab.at[3:3 + nc, HID:2 * HID].set(f32(raw["wa2"]))
    slab = slab.at[3 + nc, 0:nc].set(f32(raw["bv2"]))
    slab = slab.at[3 + nc, HID:HID + nc].set(f32(raw["ba2"]))

    return dict(w_parts=tuple(parts), slab=slab, num_classes=nc)


def mlp_reference(vis_feat, aud_feat, raw):
    """Pure-JAX f32 reference of the unfolded PyTorch forward (for validation)."""
    feat = vis_feat if aud_feat is None else jnp.concatenate([vis_feat, aud_feat], axis=1)
    eps = 1e-5

    def bn(x, g, b):
        mu = x.mean(0, keepdims=True)
        var = ((x - mu) ** 2).mean(0, keepdims=True)
        return (x - mu) / jnp.sqrt(var + eps) * g + b

    vfeat = feat @ raw["wfc"].T + raw["bfc"]
    h = vfeat @ raw["wv1"].T + raw["bv1"]
    h = jnp.where(h >= 0, h, 0.1 * h)
    h = bn(h, raw["gv"], raw["betav"])
    vout = h @ raw["wv2"].T + raw["bv2"]

    a = feat @ raw["wa1"].T + raw["ba1"]
    a = bn(a, raw["ga"], raw["betaa"])
    aout = a @ raw["wa2"].T + raw["ba2"]
    return vout, aout, jnp.tanh(vout), jnp.tanh(aout)


if __name__ == "__main__":
    key = jax.random.PRNGKey(0)
    kv, ka, kp = jax.random.split(key, 3)

    N = 8
    vis_feat = jax.random.normal(kv, (N, 1408), jnp.float32)   # visual features
    aud_feat = jax.random.normal(ka, (N, 768), jnp.float32)    # wav2vec2 features (1408+768=2176)

    raw = init_params(kp, concat_dim=2176, num_classes=1)
    packed = pack_params(raw, feat_dims=(1408, 768))

    refs = mlp_reference(vis_feat, aud_feat, raw)

    # Validate both variants (single-block and head-split); both are correct on any TPU,
    # the head-split only pays off on v7x's two TensorCores.
    for hb in (1, 2):
        outs = mlp_forward(vis_feat, aud_feat, packed, head_blocks=hb)
        jax.block_until_ready(outs)
        vout, aout, vtanh, atanh = outs
        assert vout.shape == (N, 1) and aout.shape == (N, 1)
        assert vtanh.shape == (N, 1) and atanh.shape == (N, 1)
        # Loose numerical check (the linear fold is exact; bf16 weight storage + bf16
        # activation cast perturb results at roughly the 1e-3 level).
        for got, want in zip(outs, refs):
            assert bool(jnp.all(jnp.isfinite(got)))
            assert float(jnp.max(jnp.abs(got - want))) < 5e-2

    # Device-default path (grid=(2,) on v7x, grid=(1,) on v5e/v6e).
    outs = mlp_forward(vis_feat, aud_feat, packed)
    jax.block_until_ready(outs)

    print("KERNEL_OK")
</pallas_src>

<mosaic_0001>
module attributes {stable_mosaic.version = 11 : i64} {
  func.func @kernel(%arg0: i32, %arg1: memref<8x1408xf32, #tpu.memory_space<vmem>>, %arg2: memref<8x768xf32, #tpu.memory_space<vmem>>, %arg3: memref<1408x256xbf16, #tpu.memory_space<vmem>>, %arg4: memref<768x256xbf16, #tpu.memory_space<vmem>>, %arg5: memref<8x256xf32, #tpu.memory_space<vmem>>, %arg6: memref<4x8x1xf32, #tpu.memory_space<vmem>>) attributes {dimension_semantics = [#tpu.dimension_semantics<arbitrary>], iteration_bounds = array<i64: 1>, scalar_prefetch = 0 : i64, scratch_operands = 0 : i64, tpu.core_type = #tpu.core_type<tc>, window_params = [{pipeline_mode = #tpu.pipeline_mode<synchronous>, transform_indices = @transform_0, window_bounds = array<i64: 8, 1408>}, {pipeline_mode = #tpu.pipeline_mode<synchronous>, transform_indices = @transform_1, window_bounds = array<i64: 8, 768>}, {pipeline_mode = #tpu.pipeline_mode<synchronous>, transform_indices = @transform_2, window_bounds = array<i64: 1408, 256>}, {pipeline_mode = #tpu.pipeline_mode<synchronous>, transform_indices = @transform_3, window_bounds = array<i64: 768, 256>}, {pipeline_mode = #tpu.pipeline_mode<synchronous>, transform_indices = @transform_4, window_bounds = array<i64: 8, 256>}, {pipeline_mode = #tpu.pipeline_mode<synchronous>, transform_indices = @transform_5, window_bounds = array<i64: 4, 8, 1>}]} {
    %c0 = arith.constant 0 : index
    %c0_0 = arith.constant 0 : index
    %0 = vector.load %arg1[%c0, %c0_0] : memref<8x1408xf32, #tpu.memory_space<vmem>>, vector<8x1408xf32>
    %1 = arith.truncf %0 : vector<8x1408xf32> to vector<8x1408xbf16>
    %c0_1 = arith.constant 0 : index
    %c0_2 = arith.constant 0 : index
    %2 = vector.load %arg3[%c0_1, %c0_2] : memref<1408x256xbf16, #tpu.memory_space<vmem>>, vector<1408x256xbf16>
    %cst = arith.constant dense<0.000000e+00> : vector<8x256xf32>
    %3 = tpu.matmul %1, %2, %cst {dimension_numbers = #tpu.dot_dimension_numbers<[1], [0], [0], [1], [0, 0, 1, 1], [], []>} : vector<8x1408xbf16>, vector<1408x256xbf16>, vector<8x256xf32> -> vector<8x256xf32>
    %c0_3 = arith.constant 0 : index
    %c0_4 = arith.constant 0 : index
    %4 = vector.load %arg2[%c0_3, %c0_4] : memref<8x768xf32, #tpu.memory_space<vmem>>, vector<8x768xf32>
    %5 = arith.truncf %4 : vector<8x768xf32> to vector<8x768xbf16>
    %c0_5 = arith.constant 0 : index
    %c0_6 = arith.constant 0 : index
    %6 = vector.load %arg4[%c0_5, %c0_6] : memref<768x256xbf16, #tpu.memory_space<vmem>>, vector<768x256xbf16>
    %cst_7 = arith.constant dense<0.000000e+00> : vector<8x256xf32>
    %7 = tpu.matmul %5, %6, %cst_7 {dimension_numbers = #tpu.dot_dimension_numbers<[1], [0], [0], [1], [0, 0, 1, 1], [], []>} : vector<8x768xbf16>, vector<768x256xbf16>, vector<8x256xf32> -> vector<8x256xf32>
    %8 = arith.addf %3, %7 : vector<8x256xf32>
    %c0_8 = arith.constant 0 : index
    %c0_9 = arith.constant 0 : index
    %9 = vector.load %arg5[%c0_8, %c0_9] : memref<8x256xf32, #tpu.memory_space<vmem>>, vector<1x256xf32>
    %10 = vector.broadcast %9 : vector<1x256xf32> to vector<8x256xf32>
    %11 = arith.addf %8, %10 : vector<8x256xf32>
    %12 = vector.extract_strided_slice %11 {offsets = [0, 0], sizes = [8, 128], strides = [1, 1]} : vector<8x256xf32> to vector<8x128xf32>
    %13 = vector.extract_strided_slice %11 {offsets = [0, 128], sizes = [8, 128], strides = [1, 1]} : vector<8x256xf32> to vector<8x128xf32>
    %cst_10 = arith.constant 0.000000e+00 : f32
    %14 = vector.broadcast %cst_10 : f32 to vector<8x128xf32>
    %15 = arith.cmpf oge, %12, %14 : vector<8x128xf32>
    %cst_11 = arith.constant 1.000000e-01 : f32
    %16 = vector.broadcast %cst_11 : f32 to vector<8x128xf32>
    %17 = arith.mulf %16, %12 : vector<8x128xf32>
    %18 = arith.select %15, %12, %17 : vector<8x128xi1>, vector<8x128xf32>
    %c1 = arith.constant 1 : index
    %c0_12 = arith.constant 0 : index
    %19 = vector.load %arg5[%c1, %c0_12] : memref<8x256xf32, #tpu.memory_space<vmem>>, vector<1x128xf32>
    %c2 = arith.constant 2 : index
    %c0_13 = arith.constant 0 : index
    %20 = vector.load %arg5[%c2, %c0_13] : memref<8x256xf32, #tpu.memory_space<vmem>>, vector<1x128xf32>
    %cst_14 = arith.constant dense<0.000000e+00> : vector<128xf32>
    %21 = vector.multi_reduction <add>, %18, %cst_14 [0] : vector<8x128xf32> to vector<128xf32>
    %22 = vector.shape_cast %21 : vector<128xf32> to vector<1x128xf32>
    %cst_15 = arith.constant 8.000000e+00 : f32
    %23 = vector.broadcast %cst_15 : f32 to vector<1x128xf32>
    %24 = arith.divf %22, %23 : vector<1x128xf32>
    %25 = vector.broadcast %24 : vector<1x128xf32> to vector<8x128xf32>
    %26 = arith.subf %18, %25 : vector<8x128xf32>
    %27 = arith.mulf %26, %26 : vector<8x128xf32>
    %cst_16 = arith.constant dense<0.000000e+00> : vector<128xf32>
    %28 = vector.multi_reduction <add>, %27, %cst_16 [0] : vector<8x128xf32> to vector<128xf32>
    %29 = vector.shape_cast %28 : vector<128xf32> to vector<1x128xf32>
    %cst_17 = arith.constant 8.000000e+00 : f32
    %30 = vector.broadcast %cst_17 : f32 to vector<1x128xf32>
    %31 = arith.divf %29, %30 : vector<1x128xf32>
    %32 = vector.broadcast %24 : vector<1x128xf32> to vector<8x128xf32>
    %33 = arith.subf %18, %32 : vector<8x128xf32>
    %cst_18 = arith.constant 9.99999974E-6 : f32
    %34 = vector.broadcast %cst_18 : f32 to vector<1x128xf32>
    %35 = arith.addf %31, %34 : vector<1x128xf32>
    %36 = math.rsqrt %35 : vector<1x128xf32>
    %37 = vector.broadcast %36 : vector<1x128xf32> to vector<8x128xf32>
    %38 = arith.mulf %33, %37 : vector<8x128xf32>
    %39 = vector.broadcast %19 : vector<1x128xf32> to vector<8x128xf32>
    %40 = arith.mulf %38, %39 : vector<8x128xf32>
    %41 = vector.broadcast %20 : vector<1x128xf32> to vector<8x128xf32>
    %42 = arith.addf %40, %41 : vector<8x128xf32>
    %c1_19 = arith.constant 1 : index
    %c128 = arith.constant 128 : index
    %43 = vector.load %arg5[%c1_19, %c128] : memref<8x256xf32, #tpu.memory_space<vmem>>, vector<1x128xf32>
    %c2_20 = arith.constant 2 : index
    %c128_21 = arith.constant 128 : index
    %44 = vector.load %arg5[%c2_20, %c128_21] : memref<8x256xf32, #tpu.memory_space<vmem>>, vector<1x128xf32>
    %cst_22 = arith.constant dense<0.000000e+00> : vector<128xf32>
    %45 = vector.multi_reduction <add>, %13, %cst_22 [0] : vector<8x128xf32> to vector<128xf32>
    %46 = vector.shape_cast %45 : vector<128xf32> to vector<1x128xf32>
    %cst_23 = arith.constant 8.000000e+00 : f32
    %47 = vector.broadcast %cst_23 : f32 to vector<1x128xf32>
    %48 = arith.divf %46, %47 : vector<1x128xf32>
    %49 = vector.broadcast %48 : vector<1x128xf32> to vector<8x128xf32>
    %50 = arith.subf %13, %49 : vector<8x128xf32>
    %51 = arith.mulf %50, %50 : vector<8x128xf32>
    %cst_24 = arith.constant dense<0.000000e+00> : vector<128xf32>
    %52 = vector.multi_reduction <add>, %51, %cst_24 [0] : vector<8x128xf32> to vector<128xf32>
    %53 = vector.shape_cast %52 : vector<128xf32> to vector<1x128xf32>
    %cst_25 = arith.constant 8.000000e+00 : f32
    %54 = vector.broadcast %cst_25 : f32 to vector<1x128xf32>
    %55 = arith.divf %53, %54 : vector<1x128xf32>
    %56 = vector.broadcast %48 : vector<1x128xf32> to vector<8x128xf32>
    %57 = arith.subf %13, %56 : vector<8x128xf32>
    %cst_26 = arith.constant 9.99999974E-6 : f32
    %58 = vector.broadcast %cst_26 : f32 to vector<1x128xf32>
    %59 = arith.addf %55, %58 : vector<1x128xf32>
    %60 = math.rsqrt %59 : vector<1x128xf32>
    %61 = vector.broadcast %60 : vector<1x128xf32> to vector<8x128xf32>
    %62 = arith.mulf %57, %61 : vector<8x128xf32>
    %63 = vector.broadcast %43 : vector<1x128xf32> to vector<8x128xf32>
    %64 = arith.mulf %62, %63 : vector<8x128xf32>
    %65 = vector.broadcast %44 : vector<1x128xf32> to vector<8x128xf32>
    %66 = arith.addf %64, %65 : vector<8x128xf32>
    %c3 = arith.constant 3 : index
    %c0_27 = arith.constant 0 : index
    %67 = vector.load %arg5[%c3, %c0_27] : memref<8x256xf32, #tpu.memory_space<vmem>>, vector<1x128xf32>
    %c4 = arith.constant 4 : index
    %c0_28 = arith.constant 0 : index
    %68 = vector.load %arg5[%c4, %c0_28] : memref<8x256xf32, #tpu.memory_space<vmem>>, vector<1x1xf32>
    %69 = vector.broadcast %67 : vector<1x128xf32> to vector<8x128xf32>
    %70 = arith.mulf %42, %69 : vector<8x128xf32>
    %cst_29 = arith.constant dense<0.000000e+00> : vector<8xf32>
    %71 = vector.multi_reduction <add>, %70, %cst_29 [1] : vector<8x128xf32> to vector<8xf32>
    %72 = vector.shape_cast %71 : vector<8xf32> to vector<8x1xf32>
    %73 = vector.broadcast %68 : vector<1x1xf32> to vector<8x1xf32>
    %74 = arith.addf %72, %73 : vector<8x1xf32>
    %c3_30 = arith.constant 3 : index
    %c128_31 = arith.constant 128 : index
    %75 = vector.load %arg5[%c3_30, %c128_31] : memref<8x256xf32, #tpu.memory_space<vmem>>, vector<1x128xf32>
    %c4_32 = arith.constant 4 : index
    %c128_33 = arith.constant 128 : index
    %76 = vector.load %arg5[%c4_32, %c128_33] : memref<8x256xf32, #tpu.memory_space<vmem>>, vector<1x1xf32>
    %77 = vector.broadcast %75 : vector<1x128xf32> to vector<8x128xf32>
    %78 = arith.mulf %66, %77 : vector<8x128xf32>
    %cst_34 = arith.constant dense<0.000000e+00> : vector<8xf32>
    %79 = vector.multi_reduction <add>, %78, %cst_34 [1] : vector<8x128xf32> to vector<8xf32>
    %80 = vector.shape_cast %79 : vector<8xf32> to vector<8x1xf32>
    %81 = vector.broadcast %76 : vector<1x1xf32> to vector<8x1xf32>
    %82 = arith.addf %80, %81 : vector<8x1xf32>
    %c0_35 = arith.constant 0 : index
    %c0_36 = arith.constant 0 : index
    %c0_37 = arith.constant 0 : index
    %83 = vector.load %arg6[%c0_35, %c0_36, %c0_37] : memref<4x8x1xf32, #tpu.memory_space<vmem>>, vector<1x8x1xf32>
    %84 = vector.shape_cast %83 : vector<1x8x1xf32> to vector<8x1xf32>
    %85 = vector.shape_cast %74 : vector<8x1xf32> to vector<1x8x1xf32>
    tpu.vector_store %arg6[%c0_35, %c0_36, %c0_37], %85 {strides = array<i32>} : memref<4x8x1xf32, #tpu.memory_space<vmem>>, vector<1x8x1xf32>,
    %86 = math.tanh %74 : vector<8x1xf32>
    %c1_38 = arith.constant 1 : index
    %c0_39 = arith.constant 0 : index
    %c0_40 = arith.constant 0 : index
    %87 = vector.load %arg6[%c1_38, %c0_39, %c0_40] : memref<4x8x1xf32, #tpu.memory_space<vmem>>, vector<1x8x1xf32>
    %88 = vector.shape_cast %87 : vector<1x8x1xf32> to vector<8x1xf32>
    %89 = vector.shape_cast %86 : vector<8x1xf32> to vector<1x8x1xf32>
    tpu.vector_store %arg6[%c1_38, %c0_39, %c0_40], %89 {strides = array<i32>} : memref<4x8x1xf32, #tpu.memory_space<vmem>>, vector<1x8x1xf32>,
    %c2_41 = arith.constant 2 : index
    %c0_42 = arith.constant 0 : index
    %c0_43 = arith.constant 0 : index
    %90 = vector.load %arg6[%c2_41, %c0_42, %c0_43] : memref<4x8x1xf32, #tpu.memory_space<vmem>>, vector<1x8x1xf32>
    %91 = vector.shape_cast %90 : vector<1x8x1xf32> to vector<8x1xf32>
    %92 = vector.shape_cast %82 : vector<8x1xf32> to vector<1x8x1xf32>
    tpu.vector_store %arg6[%c2_41, %c0_42, %c0_43], %92 {strides = array<i32>} : memref<4x8x1xf32, #tpu.memory_space<vmem>>, vector<1x8x1xf32>,
    %93 = math.tanh %82 : vector<8x1xf32>
    %c3_44 = arith.constant 3 : index
    %c0_45 = arith.constant 0 : index
    %c0_46 = arith.constant 0 : index
    %94 = vector.load %arg6[%c3_44, %c0_45, %c0_46] : memref<4x8x1xf32, #tpu.memory_space<vmem>>, vector<1x8x1xf32>
    %95 = vector.shape_cast %94 : vector<1x8x1xf32> to vector<8x1xf32>
    %96 = vector.shape_cast %93 : vector<8x1xf32> to vector<1x8x1xf32>
    tpu.vector_store %arg6[%c3_44, %c0_45, %c0_46], %96 {strides = array<i32>} : memref<4x8x1xf32, #tpu.memory_space<vmem>>, vector<1x8x1xf32>,
    return
  }
  func.func @transform_0(%arg0: i32) -> (i32, i32) {
    %c0_i32 = arith.constant 0 : i32
    %c0_i32_0 = arith.constant 0 : i32
    %c0_i32_1 = arith.constant 0 : i32
    return %c0_i32, %c0_i32_0 : i32, i32
  }
  func.func @transform_1(%arg0: i32) -> (i32, i32) {
    %c0_i32 = arith.constant 0 : i32
    %c0_i32_0 = arith.constant 0 : i32
    %c0_i32_1 = arith.constant 0 : i32
    return %c0_i32, %c0_i32_0 : i32, i32
  }
  func.func @transform_2(%arg0: i32) -> (i32, i32) {
    %c0_i32 = arith.constant 0 : i32
    %c0_i32_0 = arith.constant 0 : i32
    %c0_i32_1 = arith.constant 0 : i32
    return %c0_i32, %c0_i32_0 : i32, i32
  }
  func.func @transform_3(%arg0: i32) -> (i32, i32) {
    %c0_i32 = arith.constant 0 : i32
    %c0_i32_0 = arith.constant 0 : i32
    %c0_i32_1 = arith.constant 0 : i32
    return %c0_i32, %c0_i32_0 : i32, i32
  }
  func.func @transform_4(%arg0: i32) -> (i32, i32) {
    %c0_i32 = arith.constant 0 : i32
    %c0_i32_0 = arith.constant 0 : i32
    %c0_i32_1 = arith.constant 0 : i32
    return %c0_i32, %c0_i32_0 : i32, i32
  }
  func.func @transform_5(%arg0: i32) -> (i32, i32, i32) {
    %c0_i32 = arith.constant 0 : i32
    %c0_i32_0 = arith.constant 0 : i32
    %c0_i32_1 = arith.constant 0 : i32
    %c0_i32_2 = arith.constant 0 : i32
    return %c0_i32, %c0_i32_0, %c0_i32_1 : i32, i32, i32
  }
}

</mosaic_0001>

<llo_original>
// kernel: tpu_custom_call.1
$region0: #{tpu_custom_call.1}
  #allocation0 [shape = 'u32[]', space=smem, size = 0x4, offset = 0x4, fixed_abs, tag = 'smem constant byte address 0x4 - core index']
  #allocation1 [shape = 'u32[144,128]{1,0:T(1,128)}', space=vmem, size = 0x12000, scoped, tag = 'internal scratch']
  %s0 = inlined_call_operand.hbm [shape: f32[8,1408], index: 0, kind: input, shape index: {}]
  %s1 = inlined_call_operand.hbm [shape: f32[8,768], index: 1, kind: input, shape index: {}]
  %s2 = inlined_call_operand.hbm [shape: bf16[1408,256], index: 2, kind: input, shape index: {}]
  %s3 = inlined_call_operand.hbm [shape: bf16[768,256], index: 3, kind: input, shape index: {}]
  %s4 = inlined_call_operand.hbm [shape: f32[8,256], index: 4, kind: input, shape index: {}]
  %s5 = inlined_call_operand.vmem [shape: f32[4,8,1], index: 5, kind: output, shape index: {}]
  %s6 = sld [smem:[#allocation0]]
  $region50: #{tpu_custom_call.1} parent=0
    _
  %s8 = ssub.s32 1, %s6
  %s9 = scalar_select 0, %s8, %s6
  $region1: #{tpu_custom_call.1} parent=0
    #allocation2 [shape = 'u8[45056]{0}', space=vmem, size = 0xb000, scoped, tag = 'input window, operand 0, single buffered']
    #allocation3 [shape = 's32[1]{0}', space=sflag, size = 0x4, scoped, tag = 'scoped memory for tpu_custom_call.1']
    #allocation4 [shape = 'u8[24576]{0}', space=vmem, size = 0x6000, scoped, tag = 'input window, operand 1, single buffered']
    #allocation5 [shape = 's32[1]{0}', space=sflag, size = 0x4, scoped, tag = 'scoped memory for tpu_custom_call.1']
    #allocation6 [shape = 'u8[720896]{0}', space=vmem, size = 0xb0000, scoped, tag = 'input window, operand 2, single buffered']
    #allocation7 [shape = 'u8[393216]{0}', space=vmem, size = 0x60000, scoped, tag = 'input window, operand 3, single buffered']
    #allocation8 [shape = 's32[1]{0}', space=sflag, size = 0x4, scoped, tag = 'scoped memory for tpu_custom_call.1']
    #allocation9 [shape = 'u8[8192]{0}', space=vmem, size = 0x2000, scoped, tag = 'input window, operand 4, single buffered']
    %10 = vsyncpa [#allocation3], 0
    %11 = vsyncpa [#allocation5], 0
    %12 = vsyncpa [#allocation8], 0
    // Predicated region
    $region2: #{tpu_custom_call.1} parent=1 // pred_check
      _
    $region3: #{tpu_custom_call.1} parent=1 // pred_check_branch
      %14 = sbr.rel (0) target = $region5
    $region4: #{tpu_custom_call.1} parent=1 // pred_region
      %s16 = ssub.s32 1408, 1408
      %17 = vsyncadd [#allocation3], %s16
      %s19 = sshll.u32 [#allocation2], 4
      %s20 = int_to_ptr.vmem [resolvable:$true] %s19
      %22 = dma.hbm_to_vmem [thread:$0]  %s0, 1408, %s20, [#allocation3]
    $region5: #{tpu_custom_call.1} parent=1 // pred_fallthru
      _
    // Predicated region
    $region6: #{tpu_custom_call.1} parent=1 // pred_check
      _
    $region7: #{tpu_custom_call.1} parent=1 // pred_check_branch
      %24 = sbr.rel (0) target = $region9
    $region8: #{tpu_custom_call.1} parent=1 // pred_region
      %s26 = ssub.s32 768, 768
      %27 = vsyncadd [#allocation5], %s26
      %s29 = sshll.u32 [#allocation4], 4
      %s30 = int_to_ptr.vmem [resolvable:$true] %s29
      %32 = dma.hbm_to_vmem [thread:$0]  %s1, 768, %s30, [#allocation5]
    $region9: #{tpu_custom_call.1} parent=1 // pred_fallthru
      _
    // Predicated region
    $region10: #{tpu_custom_call.1} parent=1 // pred_check
      _
    $region11: #{tpu_custom_call.1} parent=1 // pred_check_branch
      %34 = sbr.rel (0) target = $region13
    $region12: #{tpu_custom_call.1} parent=1 // pred_region
      %s36 = ssub.s32 22528, 22528
      %37 = vsyncadd [#allocation5], %s36
      %s38 = sshll.u32 [#allocation6], 4
      %s39 = int_to_ptr.vmem [resolvable:$true] %s38
      %44 = dma.hbm_to_vmem [thread:$0]  %s2, 22528, %s39, [#allocation5], 128, 128, 8
    $region13: #{tpu_custom_call.1} parent=1 // pred_fallthru
      _
    // Predicated region
    $region14: #{tpu_custom_call.1} parent=1 // pred_check
      _
    $region15: #{tpu_custom_call.1} parent=1 // pred_check_branch
      %46 = sbr.rel (0) target = $region17
    $region16: #{tpu_custom_call.1} parent=1 // pred_region
      %s48 = ssub.s32 12288, 12288
      %49 = vsyncadd [#allocation8], %s48
      %s50 = sshll.u32 [#allocation7], 4
      %s51 = int_to_ptr.vmem [resolvable:$true] %s50
      %56 = dma.hbm_to_vmem [thread:$0]  %s3, 12288, %s51, [#allocation8], 128, 128, 8
    $region17: #{tpu_custom_call.1} parent=1 // pred_fallthru
      _
    // Predicated region
    $region18: #{tpu_custom_call.1} parent=1 // pred_check
      _
    $region19: #{tpu_custom_call.1} parent=1 // pred_check_branch
      %58 = sbr.rel (0) target = $region21
    $region20: #{tpu_custom_call.1} parent=1 // pred_region
      %s60 = ssub.s32 256, 256
      %61 = vsyncadd [#allocation8], %s60
      %s63 = sshll.u32 [#allocation9], 4
      %s64 = int_to_ptr.vmem [resolvable:$true] %s63
      %66 = dma.hbm_to_vmem [thread:$0]  %s4, 256, %s64, [#allocation8]
    $region21: #{tpu_custom_call.1} parent=1 // pred_fallthru
      _
    // Predicated region
    $region22: #{tpu_custom_call.1} parent=1 // pred_check
      _
    $region23: #{tpu_custom_call.1} parent=1 // pred_check_branch
      %68 = sbr.rel (0) target = $region25
    $region24: #{tpu_custom_call.1} parent=1 // pred_region
      %69 = dma.done [#allocation3], 1408
    $region25: #{tpu_custom_call.1} parent=1 // pred_fallthru
      _
    // Predicated region
    $region26: #{tpu_custom_call.1} parent=1 // pred_check
      _
    $region27: #{tpu_custom_call.1} parent=1 // pred_check_branch
      %71 = sbr.rel (0) target = $region29
    $region28: #{tpu_custom_call.1} parent=1 // pred_region
      %72 = dma.done [#allocation5], 768
    $region29: #{tpu_custom_call.1} parent=1 // pred_fallthru
      _
    // Predicated region
    $region30: #{tpu_custom_call.1} parent=1 // pred_check
      _
    $region31: #{tpu_custom_call.1} parent=1 // pred_check_branch
      %74 = sbr.rel (0) target = $region33
    $region32: #{tpu_custom_call.1} parent=1 // pred_region
      %75 = dma.done [#allocation5], 22528
    $region33: #{tpu_custom_call.1} parent=1 // pred_fallthru
      _
    // Predicated region
    $region34: #{tpu_custom_call.1} parent=1 // pred_check
      _
    $region35: #{tpu_custom_call.1} parent=1 // pred_check_branch
      %77 = sbr.rel (0) target = $region37
    $region36: #{tpu_custom_call.1} parent=1 // pred_region
      %78 = dma.done [#allocation8], 12288
    $region37: #{tpu_custom_call.1} parent=1 // pred_fallthru
      _
    // Predicated region
    $region38: #{tpu_custom_call.1} parent=1 // pred_check
      _
    $region39: #{tpu_custom_call.1} parent=1 // pred_check_branch
      %80 = sbr.rel (0) target = $region41
    $region40: #{tpu_custom_call.1} parent=1 // pred_region
      %81 = dma.done [#allocation8], 256
    $region41: #{tpu_custom_call.1} parent=1 // pred_fallthru
      _
    %v83 = vld [vmem:[#allocation2] sm:$0xff]
    %v84 = vld [vmem:[#allocation2 + $0x8] sm:$0xff]
    %v85 = vld [vmem:[#allocation2 + $0x10] sm:$0xff]
    %v86 = vld [vmem:[#allocation2 + $0x18] sm:$0xff]
    %v87 = vld [vmem:[#allocation2 + $0x20] sm:$0xff]
    %v88 = vld [vmem:[#allocation2 + $0x28] sm:$0xff]
    %v89 = vld [vmem:[#allocation2 + $0x30] sm:$0xff]
    %v90 = vld [vmem:[#allocation2 + $0x38] sm:$0xff]
    %v91 = vld [vmem:[#allocation2 + $0x40] sm:$0xff]
    %v92 = vld [vmem:[#allocation2 + $0x48] sm:$0xff]
    %v93 = vld [vmem:[#allocation2 + $0x50] sm:$0xff]
    %v94 = vpack.c.bf16 %v83, %v83
    %v95 = vpack.c.bf16 %v84, %v84
    %v96 = vpack.c.bf16 %v85, %v85
    %v97 = vpack.c.bf16 %v86, %v86
    %v98 = vpack.c.bf16 %v87, %v87
    %v99 = vpack.c.bf16 %v88, %v88
    %v100 = vpack.c.bf16 %v89, %v89
    %v101 = vpack.c.bf16 %v90, %v90
    %v102 = vpack.c.bf16 %v91, %v91
    %v103 = vpack.c.bf16 %v92, %v92
    %v104 = vpack.c.bf16 %v93, %v93
    %v105 = vld [vmem:[#allocation6] sm:$0xff]
    %v106 = vld [vmem:[#allocation6 + $0x8] sm:$0xff]
    %v107 = vld [vmem:[#allocation6 + $0x10] sm:$0xff]
    %v108 = vld [vmem:[#allocation6 + $0x18] sm:$0xff]
    %v109 = vld [vmem:[#allocation6 + $0x20] sm:$0xff]
    %v110 = vld [vmem:[#allocation6 + $0x28] sm:$0xff]
    %v111 = vld [vmem:[#allocation6 + $0x30] sm:$0xff]
    %v112 = vld [vmem:[#allocation6 + $0x38] sm:$0xff]
    %v113 = vld [vmem:[#allocation6 + $0x40] sm:$0xff]
    %v114 = vld [vmem:[#allocation6 + $0x48] sm:$0xff]
    %v115 = vld [vmem:[#allocation6 + $0x50] sm:$0xff]
    %v116 = vld [vmem:[#allocation6 + $0x58] sm:$0xff]
    %v117 = vld [vmem:[#allocation6 + $0x60] sm:$0xff]
    %v118 = vld [vmem:[#allocation6 + $0x68] sm:$0xff]
    %v119 = vld [vmem:[#allocation6 + $0x70] sm:$0xff]
    %v120 = vld [vmem:[#allocation6 + $0x78] sm:$0xff]
    %v121 = vld [vmem:[#allocation6 + $0x80] sm:$0xff]
    %v122 = vld [vmem:[#allocation6 + $0x88] sm:$0xff]
    %v123 = vld [vmem:[#allocation6 + $0x90] sm:$0xff]
    %v124 = vld [vmem:[#allocation6 + $0x98] sm:$0xff]
    %v125 = vld [vmem:[#allocation6 + $0xa0] sm:$0xff]
    %v126 = vld [vmem:[#allocation6 + $0xa8] sm:$0xff]
    %v127 = vld [vmem:[#allocation6 + $0xb0] sm:$0xff]
    %v128 = vld [vmem:[#allocation6 + $0xb8] sm:$0xff]
    %v129 = vld [vmem:[#allocation6 + $0xc0] sm:$0xff]
    %v130 = vld [vmem:[#allocation6 + $0xc8] sm:$0xff]
    %v131 = vld [vmem:[#allocation6 + $0xd0] sm:$0xff]
    %v132 = vld [vmem:[#allocation6 + $0xd8] sm:$0xff]
    %v133 = vld [vmem:[#allocation6 + $0xe0] sm:$0xff]
    %v134 = vld [vmem:[#allocation6 + $0xe8] sm:$0xff]
    %v135 = vld [vmem:[#allocation6 + $0xf0] sm:$0xff]
    %v136 = vld [vmem:[#allocation6 + $0xf8] sm:$0xff]
    %v137 = vld [vmem:[#allocation6 + $0x100] sm:$0xff]
    %v138 = vld [vmem:[#allocation6 + $0x108] sm:$0xff]
    %v139 = vld [vmem:[#allocation6 + $0x110] sm:$0xff]
    %v140 = vld [vmem:[#allocation6 + $0x118] sm:$0xff]
    %v141 = vld [vmem:[#allocation6 + $0x120] sm:$0xff]
    %v142 = vld [vmem:[#allocation6 + $0x128] sm:$0xff]
    %v143 = vld [vmem:[#allocation6 + $0x130] sm:$0xff]
    %v144 = vld [vmem:[#allocation6 + $0x138] sm:$0xff]
    %v145 = vld [vmem:[#allocation6 + $0x140] sm:$0xff]
    %v146 = vld [vmem:[#allocation6 + $0x148] sm:$0xff]
    %v147 = vld [vmem:[#allocation6 + $0x150] sm:$0xff]
    %v148 = vld [vmem:[#allocation6 + $0x158] sm:$0xff]
    %v149 = vld [vmem:[#allocation6 + $0x160] sm:$0xff]
    %v150 = vld [vmem:[#allocation6 + $0x168] sm:$0xff]
    %v151 = vld [vmem:[#allocation6 + $0x170] sm:$0xff]
    %v152 = vld [vmem:[#allocation6 + $0x178] sm:$0xff]
    %v153 = vld [vmem:[#allocation6 + $0x180] sm:$0xff]
    %v154 = vld [vmem:[#allocation6 + $0x188] sm:$0xff]
    %v155 = vld [vmem:[#allocation6 + $0x190] sm:$0xff]
    %v156 = vld [vmem:[#allocation6 + $0x198] sm:$0xff]
    %v157 = vld [vmem:[#allocation6 + $0x1a0] sm:$0xff]
    %v158 = vld [vmem:[#allocation6 + $0x1a8] sm:$0xff]
    %v159 = vld [vmem:[#allocation6 + $0x1b0] sm:$0xff]
    %v160 = vld [vmem:[#allocation6 + $0x1b8] sm:$0xff]
    %v161 = vld [vmem:[#allocation6 + $0x1c0] sm:$0xff]
    %v162 = vld [vmem:[#allocation6 + $0x1c8] sm:$0xff]
    %v163 = vld [vmem:[#allocation6 + $0x1d0] sm:$0xff]
    %v164 = vld [vmem:[#allocation6 + $0x1d8] sm:$0xff]
    %v165 = vld [vmem:[#allocation6 + $0x1e0] sm:$0xff]
    %v166 = vld [vmem:[#allocation6 + $0x1e8] sm:$0xff]
    %v167 = vld [vmem:[#allocation6 + $0x1f0] sm:$0xff]
    %v168 = vld [vmem:[#allocation6 + $0x1f8] sm:$0xff]
    %v169 = vld [vmem:[#allocation6 + $0x200] sm:$0xff]
    %v170 = vld [vmem:[#allocation6 + $0x208] sm:$0xff]
    %v171 = vld [vmem:[#allocation6 + $0x210] sm:$0xff]
    %v172 = vld [vmem:[#allocation6 + $0x218] sm:$0xff]
    %v173 = vld [vmem:[#allocation6 + $0x220] sm:$0xff]
    %v174 = vld [vmem:[#allocation6 + $0x228] sm:$0xff]
    %v175 = vld [vmem:[#allocation6 + $0x230] sm:$0xff]
    %v176 = vld [vmem:[#allocation6 + $0x238] sm:$0xff]
    %v177 = vld [vmem:[#allocation6 + $0x240] sm:$0xff]
    %v178 = vld [vmem:[#allocation6 + $0x248] sm:$0xff]
    %v179 = vld [vmem:[#allocation6 + $0x250] sm:$0xff]
    %v180 = vld [vmem:[#allocation6 + $0x258] sm:$0xff]
    %v181 = vld [vmem:[#allocation6 + $0x260] sm:$0xff]
    %v182 = vld [vmem:[#allocation6 + $0x268] sm:$0xff]
    %v183 = vld [vmem:[#allocation6 + $0x270] sm:$0xff]
    %v184 = vld [vmem:[#allocation6 + $0x278] sm:$0xff]
    %v185 = vld [vmem:[#allocation6 + $0x280] sm:$0xff]
    %v186 = vld [vmem:[#allocation6 + $0x288] sm:$0xff]
    %v187 = vld [vmem:[#allocation6 + $0x290] sm:$0xff]
    %v188 = vld [vmem:[#allocation6 + $0x298] sm:$0xff]
    %v189 = vld [vmem:[#allocation6 + $0x2a0] sm:$0xff]
    %v190 = vld [vmem:[#allocation6 + $0x2a8] sm:$0xff]
    %v191 = vld [vmem:[#allocation6 + $0x2b0] sm:$0xff]
    %v192 = vld [vmem:[#allocation6 + $0x2b8] sm:$0xff]
    %v193 = vld [vmem:[#allocation6 + $0x2c0] sm:$0xff]
    %v194 = vld [vmem:[#allocation6 + $0x2c8] sm:$0xff]
    %v195 = vld [vmem:[#allocation6 + $0x2d0] sm:$0xff]
    %v196 = vld [vmem:[#allocation6 + $0x2d8] sm:$0xff]
    %v197 = vld [vmem:[#allocation6 + $0x2e0] sm:$0xff]
    %v198 = vld [vmem:[#allocation6 + $0x2e8] sm:$0xff]
    %v199 = vld [vmem:[#allocation6 + $0x2f0] sm:$0xff]
    %v200 = vld [vmem:[#allocation6 + $0x2f8] sm:$0xff]
    %v201 = vld [vmem:[#allocation6 + $0x300] sm:$0xff]
    %v202 = vld [vmem:[#allocation6 + $0x308] sm:$0xff]
    %v203 = vld [vmem:[#allocation6 + $0x310] sm:$0xff]
    %v204 = vld [vmem:[#allocation6 + $0x318] sm:$0xff]
    %v205 = vld [vmem:[#allocation6 + $0x320] sm:$0xff]
    %v206 = vld [vmem:[#allocation6 + $0x328] sm:$0xff]
    %v207 = vld [vmem:[#allocation6 + $0x330] sm:$0xff]
    %v208 = vld [vmem:[#allocation6 + $0x338] sm:$0xff]
    %v209 = vld [vmem:[#allocation6 + $0x340] sm:$0xff]
    %v210 = vld [vmem:[#allocation6 + $0x348] sm:$0xff]
    %v211 = vld [vmem:[#allocation6 + $0x350] sm:$0xff]
    %v212 = vld [vmem:[#allocation6 + $0x358] sm:$0xff]
    %v213 = vld [vmem:[#allocation6 + $0x360] sm:$0xff]
    %v214 = vld [vmem:[#allocation6 + $0x368] sm:$0xff]
    %v215 = vld [vmem:[#allocation6 + $0x370] sm:$0xff]
    %v216 = vld [vmem:[#allocation6 + $0x378] sm:$0xff]
    %v217 = vld [vmem:[#allocation6 + $0x380] sm:$0xff]
    %v218 = vld [vmem:[#allocation6 + $0x388] sm:$0xff]
    %v219 = vld [vmem:[#allocation6 + $0x390] sm:$0xff]
    %v220 = vld [vmem:[#allocation6 + $0x398] sm:$0xff]
    %v221 = vld [vmem:[#allocation6 + $0x3a0] sm:$0xff]
    %v222 = vld [vmem:[#allocation6 + $0x3a8] sm:$0xff]
    %v223 = vld [vmem:[#allocation6 + $0x3b0] sm:$0xff]
    %v224 = vld [vmem:[#allocation6 + $0x3b8] sm:$0xff]
    %v225 = vld [vmem:[#allocation6 + $0x3c0] sm:$0xff]
    %v226 = vld [vmem:[#allocation6 + $0x3c8] sm:$0xff]
    %v227 = vld [vmem:[#allocation6 + $0x3d0] sm:$0xff]
    %v228 = vld [vmem:[#allocation6 + $0x3d8] sm:$0xff]
    %v229 = vld [vmem:[#allocation6 + $0x3e0] sm:$0xff]
    %v230 = vld [vmem:[#allocation6 + $0x3e8] sm:$0xff]
    %v231 = vld [vmem:[#allocation6 + $0x3f0] sm:$0xff]
    %v232 = vld [vmem:[#allocation6 + $0x3f8] sm:$0xff]
    %v233 = vld [vmem:[#allocation6 + $0x400] sm:$0xff]
    %v234 = vld [vmem:[#allocation6 + $0x408] sm:$0xff]
    %v235 = vld [vmem:[#allocation6 + $0x410] sm:$0xff]
    %v236 = vld [vmem:[#allocation6 + $0x418] sm:$0xff]
    %v237 = vld [vmem:[#allocation6 + $0x420] sm:$0xff]
    %v238 = vld [vmem:[#allocation6 + $0x428] sm:$0xff]
    %v239 = vld [vmem:[#allocation6 + $0x430] sm:$0xff]
    %v240 = vld [vmem:[#allocation6 + $0x438] sm:$0xff]
    %v241 = vld [vmem:[#allocation6 + $0x440] sm:$0xff]
    %v242 = vld [vmem:[#allocation6 + $0x448] sm:$0xff]
    %v243 = vld [vmem:[#allocation6 + $0x450] sm:$0xff]
    %v244 = vld [vmem:[#allocation6 + $0x458] sm:$0xff]
    %v245 = vld [vmem:[#allocation6 + $0x460] sm:$0xff]
    %v246 = vld [vmem:[#allocation6 + $0x468] sm:$0xff]
    %v247 = vld [vmem:[#allocation6 + $0x470] sm:$0xff]
    %v248 = vld [vmem:[#allocation6 + $0x478] sm:$0xff]
    %v249 = vld [vmem:[#allocation6 + $0x480] sm:$0xff]
    %v250 = vld [vmem:[#allocation6 + $0x488] sm:$0xff]
    %v251 = vld [vmem:[#allocation6 + $0x490] sm:$0xff]
    %v252 = vld [vmem:[#allocation6 + $0x498] sm:$0xff]
    %v253 = vld [vmem:[#allocation6 + $0x4a0] sm:$0xff]
    %v254 = vld [vmem:[#allocation6 + $0x4a8] sm:$0xff]
    %v255 = vld [vmem:[#allocation6 + $0x4b0] sm:$0xff]
    %v256 = vld [vmem:[#allocation6 + $0x4b8] sm:$0xff]
    %v257 = vld [vmem:[#allocation6 + $0x4c0] sm:$0xff]
    %v258 = vld [vmem:[#allocation6 + $0x4c8] sm:$0xff]
    %v259 = vld [vmem:[#allocation6 + $0x4d0] sm:$0xff]
    %v260 = vld [vmem:[#allocation6 + $0x4d8] sm:$0xff]
    %v261 = vld [vmem:[#allocation6 + $0x4e0] sm:$0xff]
    %v262 = vld [vmem:[#allocation6 + $0x4e8] sm:$0xff]
    %v263 = vld [vmem:[#allocation6 + $0x4f0] sm:$0xff]
    %v264 = vld [vmem:[#allocation6 + $0x4f8] sm:$0xff]
    %v265 = vld [vmem:[#allocation6 + $0x500] sm:$0xff]
    %v266 = vld [vmem:[#allocation6 + $0x508] sm:$0xff]
    %v267 = vld [vmem:[#allocation6 + $0x510] sm:$0xff]
    %v268 = vld [vmem:[#allocation6 + $0x518] sm:$0xff]
    %v269 = vld [vmem:[#allocation6 + $0x520] sm:$0xff]
    %v270 = vld [vmem:[#allocation6 + $0x528] sm:$0xff]
    %v271 = vld [vmem:[#allocation6 + $0x530] sm:$0xff]
    %v272 = vld [vmem:[#allocation6 + $0x538] sm:$0xff]
    %v273 = vld [vmem:[#allocation6 + $0x540] sm:$0xff]
    %v274 = vld [vmem:[#allocation6 + $0x548] sm:$0xff]
    %v275 = vld [vmem:[#allocation6 + $0x550] sm:$0xff]
    %v276 = vld [vmem:[#allocation6 + $0x558] sm:$0xff]
    %v277 = vld [vmem:[#allocation6 + $0x560] sm:$0xff]
    %v278 = vld [vmem:[#allocation6 + $0x568] sm:$0xff]
    %v279 = vld [vmem:[#allocation6 + $0x570] sm:$0xff]
    %v280 = vld [vmem:[#allocation6 + $0x578] sm:$0xff]
    %v281 = vld [vmem:[#allocation4] sm:$0xff]
    %v282 = vld [vmem:[#allocation4 + $0x8] sm:$0xff]
    %v283 = vld [vmem:[#allocation4 + $0x10] sm:$0xff]
    %v284 = vld [vmem:[#allocation4 + $0x18] sm:$0xff]
    %v285 = vld [vmem:[#allocation4 + $0x20] sm:$0xff]
    %v286 = vld [vmem:[#allocation4 + $0x28] sm:$0xff]
    %v287 = vpack.c.bf16 %v281, %v281
    %v288 = vpack.c.bf16 %v282, %v282
    %v289 = vpack.c.bf16 %v283, %v283
    %v290 = vpack.c.bf16 %v284, %v284
    %v291 = vpack.c.bf16 %v285, %v285
    %v292 = vpack.c.bf16 %v286, %v286
    %v293 = vld [vmem:[#allocation7] sm:$0xff]
    %v294 = vld [vmem:[#allocation7 + $0x8] sm:$0xff]
    %v295 = vld [vmem:[#allocation7 + $0x10] sm:$0xff]
    %v296 = vld [vmem:[#allocation7 + $0x18] sm:$0xff]
    %v297 = vld [vmem:[#allocation7 + $0x20] sm:$0xff]
    %v298 = vld [vmem:[#allocation7 + $0x28] sm:$0xff]
    %v299 = vld [vmem:[#allocation7 + $0x30] sm:$0xff]
    %v300 = vld [vmem:[#allocation7 + $0x38] sm:$0xff]
    %v301 = vld [vmem:[#allocation7 + $0x40] sm:$0xff]
    %v302 = vld [vmem:[#allocation7 + $0x48] sm:$0xff]
    %v303 = vld [vmem:[#allocation7 + $0x50] sm:$0xff]
    %v304 = vld [vmem:[#allocation7 + $0x58] sm:$0xff]
    %v305 = vld [vmem:[#allocation7 + $0x60] sm:$0xff]
    %v306 = vld [vmem:[#allocation7 + $0x68] sm:$0xff]
    %v307 = vld [vmem:[#allocation7 + $0x70] sm:$0xff]
    %v308 = vld [vmem:[#allocation7 + $0x78] sm:$0xff]
    %v309 = vld [vmem:[#allocation7 + $0x80] sm:$0xff]
    %v310 = vld [vmem:[#allocation7 + $0x88] sm:$0xff]
    %v311 = vld [vmem:[#allocation7 + $0x90] sm:$0xff]
    %v312 = vld [vmem:[#allocation7 + $0x98] sm:$0xff]
    %v313 = vld [vmem:[#allocation7 + $0xa0] sm:$0xff]
    %v314 = vld [vmem:[#allocation7 + $0xa8] sm:$0xff]
    %v315 = vld [vmem:[#allocation7 + $0xb0] sm:$0xff]
    %v316 = vld [vmem:[#allocation7 + $0xb8] sm:$0xff]
    %v317 = vld [vmem:[#allocation7 + $0xc0] sm:$0xff]
    %v318 = vld [vmem:[#allocation7 + $0xc8] sm:$0xff]
    %v319 = vld [vmem:[#allocation7 + $0xd0] sm:$0xff]
    %v320 = vld [vmem:[#allocation7 + $0xd8] sm:$0xff]
    %v321 = vld [vmem:[#allocation7 + $0xe0] sm:$0xff]
    %v322 = vld [vmem:[#allocation7 + $0xe8] sm:$0xff]
    %v323 = vld [vmem:[#allocation7 + $0xf0] sm:$0xff]
    %v324 = vld [vmem:[#allocation7 + $0xf8] sm:$0xff]
    %v325 = vld [vmem:[#allocation7 + $0x100] sm:$0xff]
    %v326 = vld [vmem:[#allocation7 + $0x108] sm:$0xff]
    %v327 = vld [vmem:[#allocation7 + $0x110] sm:$0xff]
    %v328 = vld [vmem:[#allocation7 + $0x118] sm:$0xff]
    %v329 = vld [vmem:[#allocation7 + $0x120] sm:$0xff]
    %v330 = vld [vmem:[#allocation7 + $0x128] sm:$0xff]
    %v331 = vld [vmem:[#allocation7 + $0x130] sm:$0xff]
    %v332 = vld [vmem:[#allocation7 + $0x138] sm:$0xff]
    %v333 = vld [vmem:[#allocation7 + $0x140] sm:$0xff]
    %v334 = vld [vmem:[#allocation7 + $0x148] sm:$0xff]
    %v335 = vld [vmem:[#allocation7 + $0x150] sm:$0xff]
    %v336 = vld [vmem:[#allocation7 + $0x158] sm:$0xff]
    %v337 = vld [vmem:[#allocation7 + $0x160] sm:$0xff]
    %v338 = vld [vmem:[#allocation7 + $0x168] sm:$0xff]
    %v339 = vld [vmem:[#allocation7 + $0x170] sm:$0xff]
    %v340 = vld [vmem:[#allocation7 + $0x178] sm:$0xff]
    %v341 = vld [vmem:[#allocation7 + $0x180] sm:$0xff]
    %v342 = vld [vmem:[#allocation7 + $0x188] sm:$0xff]
    %v343 = vld [vmem:[#allocation7 + $0x190] sm:$0xff]
    %v344 = vld [vmem:[#allocation7 + $0x198] sm:$0xff]
    %v345 = vld [vmem:[#allocation7 + $0x1a0] sm:$0xff]
    %v346 = vld [vmem:[#allocation7 + $0x1a8] sm:$0xff]
    %v347 = vld [vmem:[#allocation7 + $0x1b0] sm:$0xff]
    %v348 = vld [vmem:[#allocation7 + $0x1b8] sm:$0xff]
    %v349 = vld [vmem:[#allocation7 + $0x1c0] sm:$0xff]
    %v350 = vld [vmem:[#allocation7 + $0x1c8] sm:$0xff]
    %v351 = vld [vmem:[#allocation7 + $0x1d0] sm:$0xff]
    %v352 = vld [vmem:[#allocation7 + $0x1d8] sm:$0xff]
    %v353 = vld [vmem:[#allocation7 + $0x1e0] sm:$0xff]
    %v354 = vld [vmem:[#allocation7 + $0x1e8] sm:$0xff]
    %v355 = vld [vmem:[#allocation7 + $0x1f0] sm:$0xff]
    %v356 = vld [vmem:[#allocation7 + $0x1f8] sm:$0xff]
    %v357 = vld [vmem:[#allocation7 + $0x200] sm:$0xff]
    %v358 = vld [vmem:[#allocation7 + $0x208] sm:$0xff]
    %v359 = vld [vmem:[#allocation7 + $0x210] sm:$0xff]
    %v360 = vld [vmem:[#allocation7 + $0x218] sm:$0xff]
    %v361 = vld [vmem:[#allocation7 + $0x220] sm:$0xff]
    %v362 = vld [vmem:[#allocation7 + $0x228] sm:$0xff]
    %v363 = vld [vmem:[#allocation7 + $0x230] sm:$0xff]
    %v364 = vld [vmem:[#allocation7 + $0x238] sm:$0xff]
    %v365 = vld [vmem:[#allocation7 + $0x240] sm:$0xff]
    %v366 = vld [vmem:[#allocation7 + $0x248] sm:$0xff]
    %v367 = vld [vmem:[#allocation7 + $0x250] sm:$0xff]
    %v368 = vld [vmem:[#allocation7 + $0x258] sm:$0xff]
    %v369 = vld [vmem:[#allocation7 + $0x260] sm:$0xff]
    %v370 = vld [vmem:[#allocation7 + $0x268] sm:$0xff]
    %v371 = vld [vmem:[#allocation7 + $0x270] sm:$0xff]
    %v372 = vld [vmem:[#allocation7 + $0x278] sm:$0xff]
    %v373 = vld [vmem:[#allocation7 + $0x280] sm:$0xff]
    %v374 = vld [vmem:[#allocation7 + $0x288] sm:$0xff]
    %v375 = vld [vmem:[#allocation7 + $0x290] sm:$0xff]
    %v376 = vld [vmem:[#allocation7 + $0x298] sm:$0xff]
    %v377 = vld [vmem:[#allocation7 + $0x2a0] sm:$0xff]
    %v378 = vld [vmem:[#allocation7 + $0x2a8] sm:$0xff]
    %v379 = vld [vmem:[#allocation7 + $0x2b0] sm:$0xff]
    %v380 = vld [vmem:[#allocation7 + $0x2b8] sm:$0xff]
    %v381 = vld [vmem:[#allocation7 + $0x2c0] sm:$0xff]
    %v382 = vld [vmem:[#allocation7 + $0x2c8] sm:$0xff]
    %v383 = vld [vmem:[#allocation7 + $0x2d0] sm:$0xff]
    %v384 = vld [vmem:[#allocation7 + $0x2d8] sm:$0xff]
    %v385 = vld [vmem:[#allocation7 + $0x2e0] sm:$0xff]
    %v386 = vld [vmem:[#allocation7 + $0x2e8] sm:$0xff]
    %v387 = vld [vmem:[#allocation7 + $0x2f0] sm:$0xff]
    %v388 = vld [vmem:[#allocation7 + $0x2f8] sm:$0xff]
    %v485 = vunpack.c.l.b16 %v293
    %v486 = vunpack.c.h.b16 %v293
    %v487 = vunpack.c.l.b16 %v294
    %v488 = vunpack.c.h.b16 %v294
    %v489 = vunpack.c.l.b16 %v295
    %v490 = vunpack.c.h.b16 %v295
    %v491 = vunpack.c.l.b16 %v296
    %v492 = vunpack.c.h.b16 %v296
    %v493 = vunpack.c.l.b16 %v297
    %v494 = vunpack.c.h.b16 %v297
    %v495 = vunpack.c.l.b16 %v298
    %v496 = vunpack.c.h.b16 %v298
    %v497 = vunpack.c.l.b16 %v299
    %v498 = vunpack.c.h.b16 %v299
    %v499 = vunpack.c.l.b16 %v300
    %v500 = vunpack.c.h.b16 %v300
    %v501 = vunpack.c.l.b16 %v301
    %v502 = vunpack.c.h.b16 %v301
    %v503 = vunpack.c.l.b16 %v302
    %v504 = vunpack.c.h.b16 %v302
    %v505 = vunpack.c.l.b16 %v303
    %v506 = vunpack.c.h.b16 %v303
    %v507 = vunpack.c.l.b16 %v304
    %v508 = vunpack.c.h.b16 %v304
    %v509 = vunpack.c.l.b16 %v305
    %v510 = vunpack.c.h.b16 %v305
    %v511 = vunpack.c.l.b16 %v306
    %v512 = vunpack.c.h.b16 %v306
    %v513 = vunpack.c.l.b16 %v307
    %v514 = vunpack.c.h.b16 %v307
    %v515 = vunpack.c.l.b16 %v308
    %v516 = vunpack.c.h.b16 %v308
    %v517 = vunpack.c.l.b16 %v309
    %v518 = vunpack.c.h.b16 %v309
    %v519 = vunpack.c.l.b16 %v310
    %v520 = vunpack.c.h.b16 %v310
    %v521 = vunpack.c.l.b16 %v311
    %v522 = vunpack.c.h.b16 %v311
    %v523 = vunpack.c.l.b16 %v312
    %v524 = vunpack.c.h.b16 %v312
    %v525 = vunpack.c.l.b16 %v313
    %v526 = vunpack.c.h.b16 %v313
    %v527 = vunpack.c.l.b16 %v314
    %v528 = vunpack.c.h.b16 %v314
    %v529 = vunpack.c.l.b16 %v315
    %v530 = vunpack.c.h.b16 %v315
    %v531 = vunpack.c.l.b16 %v316
    %v532 = vunpack.c.h.b16 %v316
    %v533 = vunpack.c.l.b16 %v317
    %v534 = vunpack.c.h.b16 %v317
    %v535 = vunpack.c.l.b16 %v318
    %v536 = vunpack.c.h.b16 %v318
    %v537 = vunpack.c.l.b16 %v319
    %v538 = vunpack.c.h.b16 %v319
    %v539 = vunpack.c.l.b16 %v320
    %v540 = vunpack.c.h.b16 %v320
    %v541 = vunpack.c.l.b16 %v321
    %v542 = vunpack.c.h.b16 %v321
    %v543 = vunpack.c.l.b16 %v322
    %v544 = vunpack.c.h.b16 %v322
    %v545 = vunpack.c.l.b16 %v323
    %v546 = vunpack.c.h.b16 %v323
    %v547 = vunpack.c.l.b16 %v324
    %v548 = vunpack.c.h.b16 %v324
    %v549 = vunpack.c.l.b16 %v325
    %v550 = vunpack.c.h.b16 %v325
    %v551 = vunpack.c.l.b16 %v326
    %v552 = vunpack.c.h.b16 %v326
    %v553 = vunpack.c.l.b16 %v327
    %v554 = vunpack.c.h.b16 %v327
    %v555 = vunpack.c.l.b16 %v328
    %v556 = vunpack.c.h.b16 %v328
    %v557 = vunpack.c.l.b16 %v329
    %v558 = vunpack.c.h.b16 %v329
    %v559 = vunpack.c.l.b16 %v330
    %v560 = vunpack.c.h.b16 %v330
    %v561 = vunpack.c.l.b16 %v331
    %v562 = vunpack.c.h.b16 %v331
    %v563 = vunpack.c.l.b16 %v332
    %v564 = vunpack.c.h.b16 %v332
    %v565 = vunpack.c.l.b16 %v333
    %v566 = vunpack.c.h.b16 %v333
    %v567 = vunpack.c.l.b16 %v334
    %v568 = vunpack.c.h.b16 %v334
    %v569 = vunpack.c.l.b16 %v335
    %v570 = vunpack.c.h.b16 %v335
    %v571 = vunpack.c.l.b16 %v336
    %v572 = vunpack.c.h.b16 %v336
    %v573 = vunpack.c.l.b16 %v337
    %v574 = vunpack.c.h.b16 %v337
    %v575 = vunpack.c.l.b16 %v338
    %v576 = vunpack.c.h.b16 %v338
    %v577 = vunpack.c.l.b16 %v339
    %v578 = vunpack.c.h.b16 %v339
    %v579 = vunpack.c.l.b16 %v340
    %v580 = vunpack.c.h.b16 %v340
    %v581 = vunpack.c.l.b16 %v341
    %v582 = vunpack.c.h.b16 %v341
    %v583 = vunpack.c.l.b16 %v342
    %v584 = vunpack.c.h.b16 %v342
    %v585 = vunpack.c.l.b16 %v343
    %v586 = vunpack.c.h.b16 %v343
    %v587 = vunpack.c.l.b16 %v344
    %v588 = vunpack.c.h.b16 %v344
    %v589 = vunpack.c.l.b16 %v345
    %v590 = vunpack.c.h.b16 %v345
    %v591 = vunpack.c.l.b16 %v346
    %v592 = vunpack.c.h.b16 %v346
    %v593 = vunpack.c.l.b16 %v347
    %v594 = vunpack.c.h.b16 %v347
    %v595 = vunpack.c.l.b16 %v348
    %v596 = vunpack.c.h.b16 %v348
    %v597 = vunpack.c.l.b16 %v349
    %v598 = vunpack.c.h.b16 %v349
    %v599 = vunpack.c.l.b16 %v350
    %v600 = vunpack.c.h.b16 %v350
    %v601 = vunpack.c.l.b16 %v351
    %v602 = vunpack.c.h.b16 %v351
    %v603 = vunpack.c.l.b16 %v352
    %v604 = vunpack.c.h.b16 %v352
    %v605 = vunpack.c.l.b16 %v353
    %v606 = vunpack.c.h.b16 %v353
    %v607 = vunpack.c.l.b16 %v354
    %v608 = vunpack.c.h.b16 %v354
    %v609 = vunpack.c.l.b16 %v355
    %v610 = vunpack.c.h.b16 %v355
    %v611 = vunpack.c.l.b16 %v356
    %v612 = vunpack.c.h.b16 %v356
    %v613 = vunpack.c.l.b16 %v357
    %v614 = vunpack.c.h.b16 %v357
    %v615 = vunpack.c.l.b16 %v358
    %v616 = vunpack.c.h.b16 %v358
    %v617 = vunpack.c.l.b16 %v359
    %v618 = vunpack.c.h.b16 %v359
    %v619 = vunpack.c.l.b16 %v360
    %v620 = vunpack.c.h.b16 %v360
    %v621 = vunpack.c.l.b16 %v361
    %v622 = vunpack.c.h.b16 %v361
    %v623 = vunpack.c.l.b16 %v362
    %v624 = vunpack.c.h.b16 %v362
    %v625 = vunpack.c.l.b16 %v363
    %v626 = vunpack.c.h.b16 %v363
    %v627 = vunpack.c.l.b16 %v364
    %v628 = vunpack.c.h.b16 %v364
    %v629 = vunpack.c.l.b16 %v365
    %v630 = vunpack.c.h.b16 %v365
    %v631 = vunpack.c.l.b16 %v366
    %v632 = vunpack.c.h.b16 %v366
    %v633 = vunpack.c.l.b16 %v367
    %v634 = vunpack.c.h.b16 %v367
    %v635 = vunpack.c.l.b16 %v368
    %v636 = vunpack.c.h.b16 %v368
    %v637 = vunpack.c.l.b16 %v369
    %v638 = vunpack.c.h.b16 %v369
    %v639 = vunpack.c.l.b16 %v370
    %v640 = vunpack.c.h.b16 %v370
    %v641 = vunpack.c.l.b16 %v371
    %v642 = vunpack.c.h.b16 %v371
    %v643 = vunpack.c.l.b16 %v372
    %v644 = vunpack.c.h.b16 %v372
    %v645 = vunpack.c.l.b16 %v373
    %v646 = vunpack.c.h.b16 %v373
    %v647 = vunpack.c.l.b16 %v374
    %v648 = vunpack.c.h.b16 %v374
    %v649 = vunpack.c.l.b16 %v375
    %v650 = vunpack.c.h.b16 %v375
    %v651 = vunpack.c.l.b16 %v376
    %v652 = vunpack.c.h.b16 %v376
    %v653 = vunpack.c.l.b16 %v377
    %v654 = vunpack.c.h.b16 %v377
    %v655 = vunpack.c.l.b16 %v378
    %v656 = vunpack.c.h.b16 %v378
    %v657 = vunpack.c.l.b16 %v379
    %v658 = vunpack.c.h.b16 %v379
    %v659 = vunpack.c.l.b16 %v380
    %v660 = vunpack.c.h.b16 %v380
    %v661 = vunpack.c.l.b16 %v381
    %v662 = vunpack.c.h.b16 %v381
    %v663 = vunpack.c.l.b16 %v382
    %v664 = vunpack.c.h.b16 %v382
    %v665 = vunpack.c.l.b16 %v383
    %v666 = vunpack.c.h.b16 %v383
    %v667 = vunpack.c.l.b16 %v384
    %v668 = vunpack.c.h.b16 %v384
    %v669 = vunpack.c.l.b16 %v385
    %v670 = vunpack.c.h.b16 %v385
    %v671 = vunpack.c.l.b16 %v386
    %v672 = vunpack.c.h.b16 %v386
    %v673 = vunpack.c.l.b16 %v387
    %v674 = vunpack.c.h.b16 %v387
    %v675 = vunpack.c.l.b16 %v388
    %v676 = vunpack.c.h.b16 %v388
    %v677 = vpack.c.b16 %v487, %v485
    %v678 = vpack.c.b16 %v488, %v486
    %v679 = vpack.c.b16 %v491, %v489
    %v680 = vpack.c.b16 %v492, %v490
    %v681 = vpack.c.b16 %v495, %v493
    %v682 = vpack.c.b16 %v496, %v494
    %v683 = vpack.c.b16 %v499, %v497
    %v684 = vpack.c.b16 %v500, %v498
    %v685 = vpack.c.b16 %v503, %v501
    %v686 = vpack.c.b16 %v504, %v502
    %v687 = vpack.c.b16 %v507, %v505
    %v688 = vpack.c.b16 %v508, %v506
    %v689 = vpack.c.b16 %v511, %v509
    %v690 = vpack.c.b16 %v512, %v510
    %v691 = vpack.c.b16 %v515, %v513
    %v692 = vpack.c.b16 %v516, %v514
    %v693 = vpack.c.b16 %v519, %v517
    %v694 = vpack.c.b16 %v520, %v518
    %v695 = vpack.c.b16 %v523, %v521
    %v696 = vpack.c.b16 %v524, %v522
    %v697 = vpack.c.b16 %v527, %v525
    %v698 = vpack.c.b16 %v528, %v526
    %v699 = vpack.c.b16 %v531, %v529
    %v700 = vpack.c.b16 %v532, %v530
    %v701 = vpack.c.b16 %v535, %v533
    %v702 = vpack.c.b16 %v536, %v534
    %v703 = vpack.c.b16 %v539, %v537
    %v704 = vpack.c.b16 %v540, %v538
    %v705 = vpack.c.b16 %v543, %v541
    %v706 = vpack.c.b16 %v544, %v542
    %v707 = vpack.c.b16 %v547, %v545
    %v708 = vpack.c.b16 %v548, %v546
    %v709 = vpack.c.b16 %v551, %v549
    %v710 = vpack.c.b16 %v552, %v550
    %v711 = vpack.c.b16 %v555, %v553
    %v712 = vpack.c.b16 %v556, %v554
    %v713 = vpack.c.b16 %v559, %v557
    %v714 = vpack.c.b16 %v560, %v558
    %v715 = vpack.c.b16 %v563, %v561
    %v716 = vpack.c.b16 %v564, %v562
    %v717 = vpack.c.b16 %v567, %v565
    %v718 = vpack.c.b16 %v568, %v566
    %v719 = vpack.c.b16 %v571, %v569
    %v720 = vpack.c.b16 %v572, %v570
    %v721 = vpack.c.b16 %v575, %v573
    %v722 = vpack.c.b16 %v576, %v574
    %v723 = vpack.c.b16 %v579, %v577
    %v724 = vpack.c.b16 %v580, %v578
    %v725 = vpack.c.b16 %v583, %v581
    %v726 = vpack.c.b16 %v584, %v582
    %v727 = vpack.c.b16 %v587, %v585
    %v728 = vpack.c.b16 %v588, %v586
    %v729 = vpack.c.b16 %v591, %v589
    %v730 = vpack.c.b16 %v592, %v590
    %v731 = vpack.c.b16 %v595, %v593
    %v732 = vpack.c.b16 %v596, %v594
    %v733 = vpack.c.b16 %v599, %v597
    %v734 = vpack.c.b16 %v600, %v598
    %v735 = vpack.c.b16 %v603, %v601
    %v736 = vpack.c.b16 %v604, %v602
    %v737 = vpack.c.b16 %v607, %v605
    %v738 = vpack.c.b16 %v608, %v606
    %v739 = vpack.c.b16 %v611, %v609
    %v740 = vpack.c.b16 %v612, %v610
    %v741 = vpack.c.b16 %v615, %v613
    %v742 = vpack.c.b16 %v616, %v614
    %v743 = vpack.c.b16 %v619, %v617
    %v744 = vpack.c.b16 %v620, %v618
    %v745 = vpack.c.b16 %v623, %v621
    %v746 = vpack.c.b16 %v624, %v622
    %v747 = vpack.c.b16 %v627, %v625
    %v748 = vpack.c.b16 %v628, %v626
    %v749 = vpack.c.b16 %v631, %v629
    %v750 = vpack.c.b16 %v632, %v630
    %v751 = vpack.c.b16 %v635, %v633
    %v752 = vpack.c.b16 %v636, %v634
    %v753 = vpack.c.b16 %v639, %v637
    %v754 = vpack.c.b16 %v640, %v638
    %v755 = vpack.c.b16 %v643, %v641
    %v756 = vpack.c.b16 %v644, %v642
    %v757 = vpack.c.b16 %v647, %v645
    %v758 = vpack.c.b16 %v648, %v646
    %v759 = vpack.c.b16 %v651, %v649
    %v760 = vpack.c.b16 %v652, %v650
    %v761 = vpack.c.b16 %v655, %v653
    %v762 = vpack.c.b16 %v656, %v654
    %v763 = vpack.c.b16 %v659, %v657
    %v764 = vpack.c.b16 %v660, %v658
    %v765 = vpack.c.b16 %v663, %v661
    %v766 = vpack.c.b16 %v664, %v662
    %v767 = vpack.c.b16 %v667, %v665
    %v768 = vpack.c.b16 %v668, %v666
    %v769 = vpack.c.b16 %v671, %v669
    %v770 = vpack.c.b16 %v672, %v670
    %v771 = vpack.c.b16 %v675, %v673
    %v772 = vpack.c.b16 %v676, %v674
    %869 = vmatprep.subr.bf16.mxu0 %v692
    %870 = vmatpush1.bf16.msra.mxu0 %v691
    %871 = vmatprep.subr.bf16.mxu0 %v690
    %872 = vmatpush1.bf16.msra.mxu0 %v689
    %873 = vmatprep.subr.bf16.mxu0 %v688
    %874 = vmatpush1.bf16.msra.mxu0 %v687
    %875 = vmatprep.subr.bf16.mxu0 %v686
    %876 = vmatpush1.bf16.msra.mxu0 %v685
    %877 = vmatprep.subr.bf16.mxu0 %v684
    %878 = vmatpush1.bf16.msra.mxu0 %v683
    %879 = vmatprep.subr.bf16.mxu0 %v682
    %880 = vmatpush1.bf16.msra.mxu0 %v681
    %881 = vmatprep.subr.bf16.mxu0 %v680
    %882 = vmatpush1.bf16.msra.mxu0 %v679
    %883 = vmatprep.subr.bf16.mxu0 %v678
    %884 = vmatpush1.bf16.msra.mxu0 %v677
    %885 = vmatprep.subr.bf16.mxu0 %v708
    %886 = vmatpush2.bf16.msra.mxu0 %v707
    %887 = vmatprep.subr.bf16.mxu0 %v706
    %888 = vmatpush2.bf16.msra.mxu0 %v705
    %889 = vmatprep.subr.bf16.mxu0 %v704
    %890 = vmatpush2.bf16.msra.mxu0 %v703
    %891 = vmatprep.subr.bf16.mxu0 %v702
    %892 = vmatpush2.bf16.msra.mxu0 %v701
    %893 = vmatprep.subr.bf16.mxu0 %v700
    %894 = vmatpush2.bf16.msra.mxu0 %v699
    %895 = vmatprep.subr.bf16.mxu0 %v698
    %896 = vmatpush2.bf16.msra.mxu0 %v697
    %897 = vmatprep.subr.bf16.mxu0 %v696
    %898 = vmatpush2.bf16.msra.mxu0 %v695
    %899 = vmatprep.subr.bf16.mxu0 %v694
    %900 = vmatpush2.bf16.msra.mxu0 %v693
    %901 = vmatprep.mubr.bf16.mxu0 %v288
    %902 = vmatmul.mubr.bf16.gmra.mxu0 %v287
    %v903 = vpop.f32.mrf.mxu0
    %v904 = vadd.f32 0.0, %v903
    %v905 = vpop.f32.mrf.mxu0
    %v906 = vadd.f32 0.0, %v905
    %v907 = vpop.f32.mrf.mxu0
    %v908 = vpop.f32.mrf.mxu0
    %909 = vdwg.mxu0
    %910 = vmatprep.subr.bf16.mxu0 %v724
    %911 = vmatpush1.bf16.msra.mxu0 %v723
    %912 = vmatprep.subr.bf16.mxu0 %v722
    %913 = vmatpush1.bf16.msra.mxu0 %v721
    %914 = vmatprep.subr.bf16.mxu0 %v720
    %915 = vmatpush1.bf16.msra.mxu0 %v719
    %916 = vmatprep.subr.bf16.mxu0 %v718
    %917 = vmatpush1.bf16.msra.mxu0 %v717
    %918 = vmatprep.subr.bf16.mxu0 %v716
    %919 = vmatpush1.bf16.msra.mxu0 %v715
    %920 = vmatprep.subr.bf16.mxu0 %v714
    %921 = vmatpush1.bf16.msra.mxu0 %v713
    %922 = vmatprep.subr.bf16.mxu0 %v712
    %923 = vmatpush1.bf16.msra.mxu0 %v711
    %924 = vmatprep.subr.bf16.mxu0 %v710
    %925 = vmatpush1.bf16.msra.mxu0 %v709
    %926 = vmatprep.subr.bf16.mxu0 %v740
    %927 = vmatpush2.bf16.msra.mxu0 %v739
    %928 = vmatprep.subr.bf16.mxu0 %v738
    %929 = vmatpush2.bf16.msra.mxu0 %v737
    %930 = vmatprep.subr.bf16.mxu0 %v736
    %931 = vmatpush2.bf16.msra.mxu0 %v735
    %932 = vmatprep.subr.bf16.mxu0 %v734
    %933 = vmatpush2.bf16.msra.mxu0 %v733
    %934 = vmatprep.subr.bf16.mxu0 %v732
    %935 = vmatpush2.bf16.msra.mxu0 %v731
    %936 = vmatprep.subr.bf16.mxu0 %v730
    %937 = vmatpush2.bf16.msra.mxu0 %v729
    %938 = vmatprep.subr.bf16.mxu0 %v728
    %939 = vmatpush2.bf16.msra.mxu0 %v727
    %940 = vmatprep.subr.bf16.mxu0 %v726
    %941 = vmatpush2.bf16.msra.mxu0 %v725
    %942 = vmatprep.mubr.bf16.mxu0 %v290
    %943 = vmatmul.mubr.bf16.gmra.mxu0 %v289
    %v944 = vpop.f32.mrf.mxu0
    %v945 = vadd.f32 %v904, %v944
    %v946 = vpop.f32.mrf.mxu0
    %v947 = vadd.f32 %v906, %v946
    %v948 = vpop.f32.mrf.mxu0
    %v949 = vpop.f32.mrf.mxu0
    %950 = vdwg.mxu0
    %951 = vmatprep.subr.bf16.mxu0 %v756
    %952 = vmatpush1.bf16.msra.mxu0 %v755
    %953 = vmatprep.subr.bf16.mxu0 %v754
    %954 = vmatpush1.bf16.msra.mxu0 %v753
    %955 = vmatprep.subr.bf16.mxu0 %v752
    %956 = vmatpush1.bf16.msra.mxu0 %v751
    %957 = vmatprep.subr.bf16.mxu0 %v750
    %958 = vmatpush1.bf16.msra.mxu0 %v749
    %959 = vmatprep.subr.bf16.mxu0 %v748
    %960 = vmatpush1.bf16.msra.mxu0 %v747
    %961 = vmatprep.subr.bf16.mxu0 %v746
    %962 = vmatpush1.bf16.msra.mxu0 %v745
    %963 = vmatprep.subr.bf16.mxu0 %v744
    %964 = vmatpush1.bf16.msra.mxu0 %v743
    %965 = vmatprep.subr.bf16.mxu0 %v742
    %966 = vmatpush1.bf16.msra.mxu0 %v741
    %967 = vmatprep.subr.bf16.mxu0 %v772
    %968 = vmatpush2.bf16.msra.mxu0 %v771
    %969 = vmatprep.subr.bf16.mxu0 %v770
    %970 = vmatpush2.bf16.msra.mxu0 %v769
    %971 = vmatprep.subr.bf16.mxu0 %v768
    %972 = vmatpush2.bf16.msra.mxu0 %v767
    %973 = vmatprep.subr.bf16.mxu0 %v766
    %974 = vmatpush2.bf16.msra.mxu0 %v765
    %975 = vmatprep.subr.bf16.mxu0 %v764
    %976 = vmatpush2.bf16.msra.mxu0 %v763
    %977 = vmatprep.subr.bf16.mxu0 %v762
    %978 = vmatpush2.bf16.msra.mxu0 %v761
    %979 = vmatprep.subr.bf16.mxu0 %v760
    %980 = vmatpush2.bf16.msra.mxu0 %v759
    %981 = vmatprep.subr.bf16.mxu0 %v758
    %982 = vmatpush2.bf16.msra.mxu0 %v757
    %983 = vmatprep.mubr.bf16.mxu0 %v292
    %984 = vmatmul.mubr.bf16.gmra.mxu0 %v291
    %v985 = vpop.f32.mrf.mxu0
    %v986 = vadd.f32 %v945, %v985
    %v987 = vpop.f32.mrf.mxu0
    %v988 = vadd.f32 %v947, %v987
    %v989 = vpop.f32.mrf.mxu0
    %v990 = vpop.f32.mrf.mxu0
    %991 = vdwg.mxu0
    %v1168 = vunpack.c.l.b16 %v105
    %v1169 = vunpack.c.h.b16 %v105
    %v1170 = vunpack.c.l.b16 %v106
    %v1171 = vunpack.c.h.b16 %v106
    %v1172 = vunpack.c.l.b16 %v107
    %v1173 = vunpack.c.h.b16 %v107
    %v1174 = vunpack.c.l.b16 %v108
    %v1175 = vunpack.c.h.b16 %v108
    %v1176 = vunpack.c.l.b16 %v109
    %v1177 = vunpack.c.h.b16 %v109
    %v1178 = vunpack.c.l.b16 %v110
    %v1179 = vunpack.c.h.b16 %v110
    %v1180 = vunpack.c.l.b16 %v111
    %v1181 = vunpack.c.h.b16 %v111
    %v1182 = vunpack.c.l.b16 %v112
    %v1183 = vunpack.c.h.b16 %v112
    %v1184 = vunpack.c.l.b16 %v113
    %v1185 = vunpack.c.h.b16 %v113
    %v1186 = vunpack.c.l.b16 %v114
    %v1187 = vunpack.c.h.b16 %v114
    %v1188 = vunpack.c.l.b16 %v115
    %v1189 = vunpack.c.h.b16 %v115
    %v1190 = vunpack.c.l.b16 %v116
    %v1191 = vunpack.c.h.b16 %v116
    %v1192 = vunpack.c.l.b16 %v117
    %v1193 = vunpack.c.h.b16 %v117
    %v1194 = vunpack.c.l.b16 %v118
    %v1195 = vunpack.c.h.b16 %v118
    %v1196 = vunpack.c.l.b16 %v119
    %v1197 = vunpack.c.h.b16 %v119
    %v1198 = vunpack.c.l.b16 %v120
    %v1199 = vunpack.c.h.b16 %v120
    %v1200 = vunpack.c.l.b16 %v121
    %v1201 = vunpack.c.h.b16 %v121
    %v1202 = vunpack.c.l.b16 %v122
    %v1203 = vunpack.c.h.b16 %v122
    %v1204 = vunpack.c.l.b16 %v123
    %v1205 = vunpack.c.h.b16 %v123
    %v1206 = vunpack.c.l.b16 %v124
    %v1207 = vunpack.c.h.b16 %v124
    %v1208 = vunpack.c.l.b16 %v125
    %v1209 = vunpack.c.h.b16 %v125
    %v1210 = vunpack.c.l.b16 %v126
    %v1211 = vunpack.c.h.b16 %v126
    %v1212 = vunpack.c.l.b16 %v127
    %v1213 = vunpack.c.h.b16 %v127
    %v1214 = vunpack.c.l.b16 %v128
    %v1215 = vunpack.c.h.b16 %v128
    %v1216 = vunpack.c.l.b16 %v129
    %v1217 = vunpack.c.h.b16 %v129
    %v1218 = vunpack.c.l.b16 %v130
    %v1219 = vunpack.c.h.b16 %v130
    %v1220 = vunpack.c.l.b16 %v131
    %v1221 = vunpack.c.h.b16 %v131
    %v1222 = vunpack.c.l.b16 %v132
    %v1223 = vunpack.c.h.b16 %v132
    %v1224 = vunpack.c.l.b16 %v133
    %v1225 = vunpack.c.h.b16 %v133
    %v1226 = vunpack.c.l.b16 %v134
    %v1227 = vunpack.c.h.b16 %v134
    %v1228 = vunpack.c.l.b16 %v135
    %v1229 = vunpack.c.h.b16 %v135
    %v1230 = vunpack.c.l.b16 %v136
    %v1231 = vunpack.c.h.b16 %v136
    %v1232 = vunpack.c.l.b16 %v137
    %v1233 = vunpack.c.h.b16 %v137
    %v1234 = vunpack.c.l.b16 %v138
    %v1235 = vunpack.c.h.b16 %v138
    %v1236 = vunpack.c.l.b16 %v139
    %v1237 = vunpack.c.h.b16 %v139
    %v1238 = vunpack.c.l.b16 %v140
    %v1239 = vunpack.c.h.b16 %v140
    %v1240 = vunpack.c.l.b16 %v141
    %v1241 = vunpack.c.h.b16 %v141
    %v1242 = vunpack.c.l.b16 %v142
    %v1243 = vunpack.c.h.b16 %v142
    %v1244 = vunpack.c.l.b16 %v143
    %v1245 = vunpack.c.h.b16 %v143
    %v1246 = vunpack.c.l.b16 %v144
    %v1247 = vunpack.c.h.b16 %v144
    %v1248 = vunpack.c.l.b16 %v145
    %v1249 = vunpack.c.h.b16 %v145
    %v1250 = vunpack.c.l.b16 %v146
    %v1251 = vunpack.c.h.b16 %v146
    %v1252 = vunpack.c.l.b16 %v147
    %v1253 = vunpack.c.h.b16 %v147
    %v1254 = vunpack.c.l.b16 %v148
    %v1255 = vunpack.c.h.b16 %v148
    %v1256 = vunpack.c.l.b16 %v149
    %v1257 = vunpack.c.h.b16 %v149
    %v1258 = vunpack.c.l.b16 %v150
    %v1259 = vunpack.c.h.b16 %v150
    %v1260 = vunpack.c.l.b16 %v151
    %v1261 = vunpack.c.h.b16 %v151
    %v1262 = vunpack.c.l.b16 %v152
    %v1263 = vunpack.c.h.b16 %v152
    %v1264 = vunpack.c.l.b16 %v153
    %v1265 = vunpack.c.h.b16 %v153
    %v1266 = vunpack.c.l.b16 %v154
    %v1267 = vunpack.c.h.b16 %v154
    %v1268 = vunpack.c.l.b16 %v155
    %v1269 = vunpack.c.h.b16 %v155
    %v1270 = vunpack.c.l.b16 %v156
    %v1271 = vunpack.c.h.b16 %v156
    %v1272 = vunpack.c.l.b16 %v157
    %v1273 = vunpack.c.h.b16 %v157
    %v1274 = vunpack.c.l.b16 %v158
    %v1275 = vunpack.c.h.b16 %v158
    %v1276 = vunpack.c.l.b16 %v159
    %v1277 = vunpack.c.h.b16 %v159
    %v1278 = vunpack.c.l.b16 %v160
    %v1279 = vunpack.c.h.b16 %v160
    %v1280 = vunpack.c.l.b16 %v161
    %v1281 = vunpack.c.h.b16 %v161
    %v1282 = vunpack.c.l.b16 %v162
    %v1283 = vunpack.c.h.b16 %v162
    %v1284 = vunpack.c.l.b16 %v163
    %v1285 = vunpack.c.h.b16 %v163
    %v1286 = vunpack.c.l.b16 %v164
    %v1287 = vunpack.c.h.b16 %v164
    %v1288 = vunpack.c.l.b16 %v165
    %v1289 = vunpack.c.h.b16 %v165
    %v1290 = vunpack.c.l.b16 %v166
    %v1291 = vunpack.c.h.b16 %v166
    %v1292 = vunpack.c.l.b16 %v167
    %v1293 = vunpack.c.h.b16 %v167
    %v1294 = vunpack.c.l.b16 %v168
    %v1295 = vunpack.c.h.b16 %v168
    %v1296 = vunpack.c.l.b16 %v169
    %v1297 = vunpack.c.h.b16 %v169
    %v1298 = vunpack.c.l.b16 %v170
    %v1299 = vunpack.c.h.b16 %v170
    %v1300 = vunpack.c.l.b16 %v171
    %v1301 = vunpack.c.h.b16 %v171
    %v1302 = vunpack.c.l.b16 %v172
    %v1303 = vunpack.c.h.b16 %v172
    %v1304 = vunpack.c.l.b16 %v173
    %v1305 = vunpack.c.h.b16 %v173
    %v1306 = vunpack.c.l.b16 %v174
    %v1307 = vunpack.c.h.b16 %v174
    %v1308 = vunpack.c.l.b16 %v175
    %v1309 = vunpack.c.h.b16 %v175
    %v1310 = vunpack.c.l.b16 %v176
    %v1311 = vunpack.c.h.b16 %v176
    %v1312 = vunpack.c.l.b16 %v177
    %v1313 = vunpack.c.h.b16 %v177
    %v1314 = vunpack.c.l.b16 %v178
    %v1315 = vunpack.c.h.b16 %v178
    %v1316 = vunpack.c.l.b16 %v179
    %v1317 = vunpack.c.h.b16 %v179
    %v1318 = vunpack.c.l.b16 %v180
    %v1319 = vunpack.c.h.b16 %v180
    %v1320 = vunpack.c.l.b16 %v181
    %v1321 = vunpack.c.h.b16 %v181
    %v1322 = vunpack.c.l.b16 %v182
    %v1323 = vunpack.c.h.b16 %v182
    %v1324 = vunpack.c.l.b16 %v183
    %v1325 = vunpack.c.h.b16 %v183
    %v1326 = vunpack.c.l.b16 %v184
    %v1327 = vunpack.c.h.b16 %v184
    %v1328 = vunpack.c.l.b16 %v185
    %v1329 = vunpack.c.h.b16 %v185
    %v1330 = vunpack.c.l.b16 %v186
    %v1331 = vunpack.c.h.b16 %v186
    %v1332 = vunpack.c.l.b16 %v187
    %v1333 = vunpack.c.h.b16 %v187
    %v1334 = vunpack.c.l.b16 %v188
    %v1335 = vunpack.c.h.b16 %v188
    %v1336 = vunpack.c.l.b16 %v189
    %v1337 = vunpack.c.h.b16 %v189
    %v1338 = vunpack.c.l.b16 %v190
    %v1339 = vunpack.c.h.b16 %v190
    %v1340 = vunpack.c.l.b16 %v191
    %v1341 = vunpack.c.h.b16 %v191
    %v1342 = vunpack.c.l.b16 %v192
    %v1343 = vunpack.c.h.b16 %v192
    %v1344 = vunpack.c.l.b16 %v193
    %v1345 = vunpack.c.h.b16 %v193
    %v1346 = vunpack.c.l.b16 %v194
    %v1347 = vunpack.c.h.b16 %v194
    %v1348 = vunpack.c.l.b16 %v195
    %v1349 = vunpack.c.h.b16 %v195
    %v1350 = vunpack.c.l.b16 %v196
    %v1351 = vunpack.c.h.b16 %v196
    %v1352 = vunpack.c.l.b16 %v197
    %v1353 = vunpack.c.h.b16 %v197
    %v1354 = vunpack.c.l.b16 %v198
    %v1355 = vunpack.c.h.b16 %v198
    %v1356 = vunpack.c.l.b16 %v199
    %v1357 = vunpack.c.h.b16 %v199
    %v1358 = vunpack.c.l.b16 %v200
    %v1359 = vunpack.c.h.b16 %v200
    %v1360 = vunpack.c.l.b16 %v201
    %v1361 = vunpack.c.h.b16 %v201
    %v1362 = vunpack.c.l.b16 %v202
    %v1363 = vunpack.c.h.b16 %v202
    %v1364 = vunpack.c.l.b16 %v203
    %v1365 = vunpack.c.h.b16 %v203
    %v1366 = vunpack.c.l.b16 %v204
    %v1367 = vunpack.c.h.b16 %v204
    %v1368 = vunpack.c.l.b16 %v205
    %v1369 = vunpack.c.h.b16 %v205
    %v1370 = vunpack.c.l.b16 %v206
    %v1371 = vunpack.c.h.b16 %v206
    %v1372 = vunpack.c.l.b16 %v207
    %v1373 = vunpack.c.h.b16 %v207
    %v1374 = vunpack.c.l.b16 %v208
    %v1375 = vunpack.c.h.b16 %v208
    %v1376 = vunpack.c.l.b16 %v209
    %v1377 = vunpack.c.h.b16 %v209
    %v1378 = vunpack.c.l.b16 %v210
    %v1379 = vunpack.c.h.b16 %v210
    %v1380 = vunpack.c.l.b16 %v211
    %v1381 = vunpack.c.h.b16 %v211
    %v1382 = vunpack.c.l.b16 %v212
    %v1383 = vunpack.c.h.b16 %v212
    %v1384 = vunpack.c.l.b16 %v213
    %v1385 = vunpack.c.h.b16 %v213
    %v1386 = vunpack.c.l.b16 %v214
    %v1387 = vunpack.c.h.b16 %v214
    %v1388 = vunpack.c.l.b16 %v215
    %v1389 = vunpack.c.h.b16 %v215
    %v1390 = vunpack.c.l.b16 %v216
    %v1391 = vunpack.c.h.b16 %v216
    %v1392 = vunpack.c.l.b16 %v217
    %v1393 = vunpack.c.h.b16 %v217
    %v1394 = vunpack.c.l.b16 %v218
    %v1395 = vunpack.c.h.b16 %v218
    %v1396 = vunpack.c.l.b16 %v219
    %v1397 = vunpack.c.h.b16 %v219
    %v1398 = vunpack.c.l.b16 %v220
    %v1399 = vunpack.c.h.b16 %v220
    %v1400 = vunpack.c.l.b16 %v221
    %v1401 = vunpack.c.h.b16 %v221
    %v1402 = vunpack.c.l.b16 %v222
    %v1403 = vunpack.c.h.b16 %v222
    %v1404 = vunpack.c.l.b16 %v223
    %v1405 = vunpack.c.h.b16 %v223
    %v1406 = vunpack.c.l.b16 %v224
    %v1407 = vunpack.c.h.b16 %v224
    %v1408 = vunpack.c.l.b16 %v225
    %v1409 = vunpack.c.h.b16 %v225
    %v1410 = vunpack.c.l.b16 %v226
    %v1411 = vunpack.c.h.b16 %v226
    %v1412 = vunpack.c.l.b16 %v227
    %v1413 = vunpack.c.h.b16 %v227
    %v1414 = vunpack.c.l.b16 %v228
    %v1415 = vunpack.c.h.b16 %v228
    %v1416 = vunpack.c.l.b16 %v229
    %v1417 = vunpack.c.h.b16 %v229
    %v1418 = vunpack.c.l.b16 %v230
    %v1419 = vunpack.c.h.b16 %v230
    %v1420 = vunpack.c.l.b16 %v231
    %v1421 = vunpack.c.h.b16 %v231
    %v1422 = vunpack.c.l.b16 %v232
    %v1423 = vunpack.c.h.b16 %v232
    %v1424 = vunpack.c.l.b16 %v233
    %v1425 = vunpack.c.h.b16 %v233
    %v1426 = vunpack.c.l.b16 %v234
    %v1427 = vunpack.c.h.b16 %v234
    %v1428 = vunpack.c.l.b16 %v235
    %v1429 = vunpack.c.h.b16 %v235
    %v1430 = vunpack.c.l.b16 %v236
    %v1431 = vunpack.c.h.b16 %v236
    %v1432 = vunpack.c.l.b16 %v237
    %v1433 = vunpack.c.h.b16 %v237
    %v1434 = vunpack.c.l.b16 %v238
    %v1435 = vunpack.c.h.b16 %v238
    %v1436 = vunpack.c.l.b16 %v239
    %v1437 = vunpack.c.h.b16 %v239
    %v1438 = vunpack.c.l.b16 %v240
    %v1439 = vunpack.c.h.b16 %v240
    %v1440 = vunpack.c.l.b16 %v241
    %v1441 = vunpack.c.h.b16 %v241
    %v1442 = vunpack.c.l.b16 %v242
    %v1443 = vunpack.c.h.b16 %v242
    %v1444 = vunpack.c.l.b16 %v243
    %v1445 = vunpack.c.h.b16 %v243
    %v1446 = vunpack.c.l.b16 %v244
    %v1447 = vunpack.c.h.b16 %v244
    %v1448 = vunpack.c.l.b16 %v245
    %v1449 = vunpack.c.h.b16 %v245
    %v1450 = vunpack.c.l.b16 %v246
    %v1451 = vunpack.c.h.b16 %v246
    %v1452 = vunpack.c.l.b16 %v247
    %v1453 = vunpack.c.h.b16 %v247
    %v1454 = vunpack.c.l.b16 %v248
    %v1455 = vunpack.c.h.b16 %v248
    %v1456 = vunpack.c.l.b16 %v249
    %v1457 = vunpack.c.h.b16 %v249
    %v1458 = vunpack.c.l.b16 %v250
    %v1459 = vunpack.c.h.b16 %v250
    %v1460 = vunpack.c.l.b16 %v251
    %v1461 = vunpack.c.h.b16 %v251
    %v1462 = vunpack.c.l.b16 %v252
    %v1463 = vunpack.c.h.b16 %v252
    %v1464 = vunpack.c.l.b16 %v253
    %v1465 = vunpack.c.h.b16 %v253
    %v1466 = vunpack.c.l.b16 %v254
    %v1467 = vunpack.c.h.b16 %v254
    %v1468 = vunpack.c.l.b16 %v255
    %v1469 = vunpack.c.h.b16 %v255
    %v1470 = vunpack.c.l.b16 %v256
    %v1471 = vunpack.c.h.b16 %v256
    %v1472 = vunpack.c.l.b16 %v257
    %v1473 = vunpack.c.h.b16 %v257
    %v1474 = vunpack.c.l.b16 %v258
    %v1475 = vunpack.c.h.b16 %v258
    %v1476 = vunpack.c.l.b16 %v259
    %v1477 = vunpack.c.h.b16 %v259
    %v1478 = vunpack.c.l.b16 %v260
    %v1479 = vunpack.c.h.b16 %v260
    %v1480 = vunpack.c.l.b16 %v261
    %v1481 = vunpack.c.h.b16 %v261
    %v1482 = vunpack.c.l.b16 %v262
    %v1483 = vunpack.c.h.b16 %v262
    %v1484 = vunpack.c.l.b16 %v263
    %v1485 = vunpack.c.h.b16 %v263
    %v1486 = vunpack.c.l.b16 %v264
    %v1487 = vunpack.c.h.b16 %v264
    %v1488 = vunpack.c.l.b16 %v265
    %v1489 = vunpack.c.h.b16 %v265
    %v1490 = vunpack.c.l.b16 %v266
    %v1491 = vunpack.c.h.b16 %v266
    %v1492 = vunpack.c.l.b16 %v267
    %v1493 = vunpack.c.h.b16 %v267
    %v1494 = vunpack.c.l.b16 %v268
    %v1495 = vunpack.c.h.b16 %v268
    %v1496 = vunpack.c.l.b16 %v269
    %v1497 = vunpack.c.h.b16 %v269
    %v1498 = vunpack.c.l.b16 %v270
    %v1499 = vunpack.c.h.b16 %v270
    %v1500 = vunpack.c.l.b16 %v271
    %v1501 = vunpack.c.h.b16 %v271
    %v1502 = vunpack.c.l.b16 %v272
    %v1503 = vunpack.c.h.b16 %v272
    %v1504 = vunpack.c.l.b16 %v273
    %v1505 = vunpack.c.h.b16 %v273
    %v1506 = vunpack.c.l.b16 %v274
    %v1507 = vunpack.c.h.b16 %v274
    %v1508 = vunpack.c.l.b16 %v275
    %v1509 = vunpack.c.h.b16 %v275
    %v1510 = vunpack.c.l.b16 %v276
    %v1511 = vunpack.c.h.b16 %v276
    %v1512 = vunpack.c.l.b16 %v277
    %v1513 = vunpack.c.h.b16 %v277
    %v1514 = vunpack.c.l.b16 %v278
    %v1515 = vunpack.c.h.b16 %v278
    %v1516 = vunpack.c.l.b16 %v279
    %v1517 = vunpack.c.h.b16 %v279
    %v1518 = vunpack.c.l.b16 %v280
    %v1519 = vunpack.c.h.b16 %v280
    %v1520 = vpack.c.b16 %v1170, %v1168
    %v1521 = vpack.c.b16 %v1171, %v1169
    %v1522 = vpack.c.b16 %v1174, %v1172
    %v1523 = vpack.c.b16 %v1175, %v1173
    %v1524 = vpack.c.b16 %v1178, %v1176
    %v1525 = vpack.c.b16 %v1179, %v1177
    %v1526 = vpack.c.b16 %v1182, %v1180
    %v1527 = vpack.c.b16 %v1183, %v1181
    %v1528 = vpack.c.b16 %v1186, %v1184
    %v1529 = vpack.c.b16 %v1187, %v1185
    %v1530 = vpack.c.b16 %v1190, %v1188
    %v1531 = vpack.c.b16 %v1191, %v1189
    %v1532 = vpack.c.b16 %v1194, %v1192
    %v1533 = vpack.c.b16 %v1195, %v1193
    %v1534 = vpack.c.b16 %v1198, %v1196
    %v1535 = vpack.c.b16 %v1199, %v1197
    %v1536 = vpack.c.b16 %v1202, %v1200
    %v1537 = vpack.c.b16 %v1203, %v1201
    %v1538 = vpack.c.b16 %v1206, %v1204
    %v1539 = vpack.c.b16 %v1207, %v1205
    %v1540 = vpack.c.b16 %v1210, %v1208
    %v1541 = vpack.c.b16 %v1211, %v1209
    %v1542 = vpack.c.b16 %v1214, %v1212
    %v1543 = vpack.c.b16 %v1215, %v1213
    %v1544 = vpack.c.b16 %v1218, %v1216
    %v1545 = vpack.c.b16 %v1219, %v1217
    %v1546 = vpack.c.b16 %v1222, %v1220
    %v1547 = vpack.c.b16 %v1223, %v1221
    %v1548 = vpack.c.b16 %v1226, %v1224
    %v1549 = vpack.c.b16 %v1227, %v1225
    %v1550 = vpack.c.b16 %v1230, %v1228
    %v1551 = vpack.c.b16 %v1231, %v1229
    %v1552 = vpack.c.b16 %v1234, %v1232
    %v1553 = vpack.c.b16 %v1235, %v1233
    %v1554 = vpack.c.b16 %v1238, %v1236
    %v1555 = vpack.c.b16 %v1239, %v1237
    %v1556 = vpack.c.b16 %v1242, %v1240
    %v1557 = vpack.c.b16 %v1243, %v1241
    %v1558 = vpack.c.b16 %v1246, %v1244
    %v1559 = vpack.c.b16 %v1247, %v1245
    %v1560 = vpack.c.b16 %v1250, %v1248
    %v1561 = vpack.c.b16 %v1251, %v1249
    %v1562 = vpack.c.b16 %v1254, %v1252
    %v1563 = vpack.c.b16 %v1255, %v1253
    %v1564 = vpack.c.b16 %v1258, %v1256
    %v1565 = vpack.c.b16 %v1259, %v1257
    %v1566 = vpack.c.b16 %v1262, %v1260
    %v1567 = vpack.c.b16 %v1263, %v1261
    %v1568 = vpack.c.b16 %v1266, %v1264
    %v1569 = vpack.c.b16 %v1267, %v1265
    %v1570 = vpack.c.b16 %v1270, %v1268
    %v1571 = vpack.c.b16 %v1271, %v1269
    %v1572 = vpack.c.b16 %v1274, %v1272
    %v1573 = vpack.c.b16 %v1275, %v1273
    %v1574 = vpack.c.b16 %v1278, %v1276
    %v1575 = vpack.c.b16 %v1279, %v1277
    %v1576 = vpack.c.b16 %v1282, %v1280
    %v1577 = vpack.c.b16 %v1283, %v1281
    %v1578 = vpack.c.b16 %v1286, %v1284
    %v1579 = vpack.c.b16 %v1287, %v1285
    %v1580 = vpack.c.b16 %v1290, %v1288
    %v1581 = vpack.c.b16 %v1291, %v1289
    %v1582 = vpack.c.b16 %v1294, %v1292
    %v1583 = vpack.c.b16 %v1295, %v1293
    %v1584 = vpack.c.b16 %v1298, %v1296
    %v1585 = vpack.c.b16 %v1299, %v1297
    %v1586 = vpack.c.b16 %v1302, %v1300
    %v1587 = vpack.c.b16 %v1303, %v1301
    %v1588 = vpack.c.b16 %v1306, %v1304
    %v1589 = vpack.c.b16 %v1307, %v1305
    %v1590 = vpack.c.b16 %v1310, %v1308
    %v1591 = vpack.c.b16 %v1311, %v1309
    %v1592 = vpack.c.b16 %v1314, %v1312
    %v1593 = vpack.c.b16 %v1315, %v1313
    %v1594 = vpack.c.b16 %v1318, %v1316
    %v1595 = vpack.c.b16 %v1319, %v1317
    %v1596 = vpack.c.b16 %v1322, %v1320
    %v1597 = vpack.c.b16 %v1323, %v1321
    %v1598 = vpack.c.b16 %v1326, %v1324
    %v1599 = vpack.c.b16 %v1327, %v1325
    %v1600 = vpack.c.b16 %v1330, %v1328
    %v1601 = vpack.c.b16 %v1331, %v1329
    %v1602 = vpack.c.b16 %v1334, %v1332
    %v1603 = vpack.c.b16 %v1335, %v1333
    %v1604 = vpack.c.b16 %v1338, %v1336
    %v1605 = vpack.c.b16 %v1339, %v1337
    %v1606 = vpack.c.b16 %v1342, %v1340
    %v1607 = vpack.c.b16 %v1343, %v1341
    %v1608 = vpack.c.b16 %v1346, %v1344
    %v1609 = vpack.c.b16 %v1347, %v1345
    %v1610 = vpack.c.b16 %v1350, %v1348
    %v1611 = vpack.c.b16 %v1351, %v1349
    %v1612 = vpack.c.b16 %v1354, %v1352
    %v1613 = vpack.c.b16 %v1355, %v1353
    %v1614 = vpack.c.b16 %v1358, %v1356
    %v1615 = vpack.c.b16 %v1359, %v1357
    %v1616 = vpack.c.b16 %v1362, %v1360
    %v1617 = vpack.c.b16 %v1363, %v1361
    %v1618 = vpack.c.b16 %v1366, %v1364
    %v1619 = vpack.c.b16 %v1367, %v1365
    %v1620 = vpack.c.b16 %v1370, %v1368
    %v1621 = vpack.c.b16 %v1371, %v1369
    %v1622 = vpack.c.b16 %v1374, %v1372
    %v1623 = vpack.c.b16 %v1375, %v1373
    %v1624 = vpack.c.b16 %v1378, %v1376
    %v1625 = vpack.c.b16 %v1379, %v1377
    %v1626 = vpack.c.b16 %v1382, %v1380
    %v1627 = vpack.c.b16 %v1383, %v1381
    %v1628 = vpack.c.b16 %v1386, %v1384
    %v1629 = vpack.c.b16 %v1387, %v1385
    %v1630 = vpack.c.b16 %v1390, %v1388
    %v1631 = vpack.c.b16 %v1391, %v1389
    %v1632 = vpack.c.b16 %v1394, %v1392
    %v1633 = vpack.c.b16 %v1395, %v1393
    %v1634 = vpack.c.b16 %v1398, %v1396
    %v1635 = vpack.c.b16 %v1399, %v1397
    %v1636 = vpack.c.b16 %v1402, %v1400
    %v1637 = vpack.c.b16 %v1403, %v1401
    %v1638 = vpack.c.b16 %v1406, %v1404
    %v1639 = vpack.c.b16 %v1407, %v1405
    %v1640 = vpack.c.b16 %v1410, %v1408
    %v1641 = vpack.c.b16 %v1411, %v1409
    %v1642 = vpack.c.b16 %v1414, %v1412
    %v1643 = vpack.c.b16 %v1415, %v1413
    %v1644 = vpack.c.b16 %v1418, %v1416
    %v1645 = vpack.c.b16 %v1419, %v1417
    %v1646 = vpack.c.b16 %v1422, %v1420
    %v1647 = vpack.c.b16 %v1423, %v1421
    %v1648 = vpack.c.b16 %v1426, %v1424
    %v1649 = vpack.c.b16 %v1427, %v1425
    %v1650 = vpack.c.b16 %v1430, %v1428
    %v1651 = vpack.c.b16 %v1431, %v1429
    %v1652 = vpack.c.b16 %v1434, %v1432
    %v1653 = vpack.c.b16 %v1435, %v1433
    %v1654 = vpack.c.b16 %v1438, %v1436
    %v1655 = vpack.c.b16 %v1439, %v1437
    %v1656 = vpack.c.b16 %v1442, %v1440
    %v1657 = vpack.c.b16 %v1443, %v1441
    %v1658 = vpack.c.b16 %v1446, %v1444
    %v1659 = vpack.c.b16 %v1447, %v1445
    %v1660 = vpack.c.b16 %v1450, %v1448
    %v1661 = vpack.c.b16 %v1451, %v1449
    %v1662 = vpack.c.b16 %v1454, %v1452
    %v1663 = vpack.c.b16 %v1455, %v1453
    %v1664 = vpack.c.b16 %v1458, %v1456
    %v1665 = vpack.c.b16 %v1459, %v1457
    %v1666 = vpack.c.b16 %v1462, %v1460
    %v1667 = vpack.c.b16 %v1463, %v1461
    %v1668 = vpack.c.b16 %v1466, %v1464
    %v1669 = vpack.c.b16 %v1467, %v1465
    %v1670 = vpack.c.b16 %v1470, %v1468
    %v1671 = vpack.c.b16 %v1471, %v1469
    %v1672 = vpack.c.b16 %v1474, %v1472
    %v1673 = vpack.c.b16 %v1475, %v1473
    %v1674 = vpack.c.b16 %v1478, %v1476
    %v1675 = vpack.c.b16 %v1479, %v1477
    %v1676 = vpack.c.b16 %v1482, %v1480
    %v1677 = vpack.c.b16 %v1483, %v1481
    %v1678 = vpack.c.b16 %v1486, %v1484
    %v1679 = vpack.c.b16 %v1487, %v1485
    %v1680 = vpack.c.b16 %v1490, %v1488
    %v1681 = vpack.c.b16 %v1491, %v1489
    %v1682 = vpack.c.b16 %v1494, %v1492
    %v1683 = vpack.c.b16 %v1495, %v1493
    %v1684 = vpack.c.b16 %v1498, %v1496
    %v1685 = vpack.c.b16 %v1499, %v1497
    %v1686 = vpack.c.b16 %v1502, %v1500
    %v1687 = vpack.c.b16 %v1503, %v1501
    %v1688 = vpack.c.b16 %v1506, %v1504
    %v1689 = vpack.c.b16 %v1507, %v1505
    %v1690 = vpack.c.b16 %v1510, %v1508
    %v1691 = vpack.c.b16 %v1511, %v1509
    %v1692 = vpack.c.b16 %v1514, %v1512
    %v1693 = vpack.c.b16 %v1515, %v1513
    %v1694 = vpack.c.b16 %v1518, %v1516
    %v1695 = vpack.c.b16 %v1519, %v1517
    %1872 = vmatprep.subr.bf16.mxu0 %v1535
    %1873 = vmatpush1.bf16.msra.mxu0 %v1534
    %1874 = vmatprep.subr.bf16.mxu0 %v1533
    %1875 = vmatpush1.bf16.msra.mxu0 %v1532
    %1876 = vmatprep.subr.bf16.mxu0 %v1531
    %1877 = vmatpush1.bf16.msra.mxu0 %v1530
    %1878 = vmatprep.subr.bf16.mxu0 %v1529
    %1879 = vmatpush1.bf16.msra.mxu0 %v1528
    %1880 = vmatprep.subr.bf16.mxu0 %v1527
    %1881 = vmatpush1.bf16.msra.mxu0 %v1526
    %1882 = vmatprep.subr.bf16.mxu0 %v1525
    %1883 = vmatpush1.bf16.msra.mxu0 %v1524
    %1884 = vmatprep.subr.bf16.mxu0 %v1523
    %1885 = vmatpush1.bf16.msra.mxu0 %v1522
    %1886 = vmatprep.subr.bf16.mxu0 %v1521
    %1887 = vmatpush1.bf16.msra.mxu0 %v1520
    %1888 = vmatprep.subr.bf16.mxu0 %v1551
    %1889 = vmatpush2.bf16.msra.mxu0 %v1550
    %1890 = vmatprep.subr.bf16.mxu0 %v1549
    %1891 = vmatpush2.bf16.msra.mxu0 %v1548
    %1892 = vmatprep.subr.bf16.mxu0 %v1547
    %1893 = vmatpush2.bf16.msra.mxu0 %v1546
    %1894 = vmatprep.subr.bf16.mxu0 %v1545
    %1895 = vmatpush2.bf16.msra.mxu0 %v1544
    %1896 = vmatprep.subr.bf16.mxu0 %v1543
    %1897 = vmatpush2.bf16.msra.mxu0 %v1542
    %1898 = vmatprep.subr.bf16.mxu0 %v1541
    %1899 = vmatpush2.bf16.msra.mxu0 %v1540
    %1900 = vmatprep.subr.bf16.mxu0 %v1539
    %1901 = vmatpush2.bf16.msra.mxu0 %v1538
    %1902 = vmatprep.subr.bf16.mxu0 %v1537
    %1903 = vmatpush2.bf16.msra.mxu0 %v1536
    %1904 = vmatprep.mubr.bf16.mxu0 %v95
    %1905 = vmatmul.mubr.bf16.gmra.mxu0 %v94
    %v1906 = vpop.f32.mrf.mxu0
    %v1907 = vadd.f32 %v986, %v1906
    %v1908 = vpop.f32.mrf.mxu0
    %v1909 = vadd.f32 %v988, %v1908
    %v1910 = vpop.f32.mrf.mxu0
    %v1911 = vpop.f32.mrf.mxu0
    %1912 = vdwg.mxu0
    %1913 = vmatprep.subr.bf16.mxu0 %v1567
    %1914 = vmatpush1.bf16.msra.mxu0 %v1566
    %1915 = vmatprep.subr.bf16.mxu0 %v1565
    %1916 = vmatpush1.bf16.msra.mxu0 %v1564
    %1917 = vmatprep.subr.bf16.mxu0 %v1563
    %1918 = vmatpush1.bf16.msra.mxu0 %v1562
    %1919 = vmatprep.subr.bf16.mxu0 %v1561
    %1920 = vmatpush1.bf16.msra.mxu0 %v1560
    %1921 = vmatprep.subr.bf16.mxu0 %v1559
    %1922 = vmatpush1.bf16.msra.mxu0 %v1558
    %1923 = vmatprep.subr.bf16.mxu0 %v1557
    %1924 = vmatpush1.bf16.msra.mxu0 %v1556
    %1925 = vmatprep.subr.bf16.mxu0 %v1555
    %1926 = vmatpush1.bf16.msra.mxu0 %v1554
    %1927 = vmatprep.subr.bf16.mxu0 %v1553
    %1928 = vmatpush1.bf16.msra.mxu0 %v1552
    %1929 = vmatprep.subr.bf16.mxu0 %v1583
    %1930 = vmatpush2.bf16.msra.mxu0 %v1582
    %1931 = vmatprep.subr.bf16.mxu0 %v1581
    %1932 = vmatpush2.bf16.msra.mxu0 %v1580
    %1933 = vmatprep.subr.bf16.mxu0 %v1579
    %1934 = vmatpush2.bf16.msra.mxu0 %v1578
    %1935 = vmatprep.subr.bf16.mxu0 %v1577
    %1936 = vmatpush2.bf16.msra.mxu0 %v1576
    %1937 = vmatprep.subr.bf16.mxu0 %v1575
    %1938 = vmatpush2.bf16.msra.mxu0 %v1574
    %1939 = vmatprep.subr.bf16.mxu0 %v1573
    %1940 = vmatpush2.bf16.msra.mxu0 %v1572
    %1941 = vmatprep.subr.bf16.mxu0 %v1571
    %1942 = vmatpush2.bf16.msra.mxu0 %v1570
    %1943 = vmatprep.subr.bf16.mxu0 %v1569
    %1944 = vmatpush2.bf16.msra.mxu0 %v1568
    %1945 = vmatprep.mubr.bf16.mxu0 %v97
    %1946 = vmatmul.mubr.bf16.gmra.mxu0 %v96
    %v1947 = vpop.f32.mrf.mxu0
    %v1948 = vadd.f32 %v1907, %v1947
    %v1949 = vpop.f32.mrf.mxu0
    %v1950 = vadd.f32 %v1909, %v1949
    %v1951 = vpop.f32.mrf.mxu0
    %v1952 = vpop.f32.mrf.mxu0
    %1953 = vdwg.mxu0
    %1954 = vmatprep.subr.bf16.mxu0 %v1599
    %1955 = vmatpush1.bf16.msra.mxu0 %v1598
    %1956 = vmatprep.subr.bf16.mxu0 %v1597
    %1957 = vmatpush1.bf16.msra.mxu0 %v1596
    %1958 = vmatprep.subr.bf16.mxu0 %v1595
    %1959 = vmatpush1.bf16.msra.mxu0 %v1594
    %1960 = vmatprep.subr.bf16.mxu0 %v1593
    %1961 = vmatpush1.bf16.msra.mxu0 %v1592
    %1962 = vmatprep.subr.bf16.mxu0 %v1591
    %1963 = vmatpush1.bf16.msra.mxu0 %v1590
    %1964 = vmatprep.subr.bf16.mxu0 %v1589
    %1965 = vmatpush1.bf16.msra.mxu0 %v1588
    %1966 = vmatprep.subr.bf16.mxu0 %v1587
    %1967 = vmatpush1.bf16.msra.mxu0 %v1586
    %1968 = vmatprep.subr.bf16.mxu0 %v1585
    %1969 = vmatpush1.bf16.msra.mxu0 %v1584
    %1970 = vmatprep.subr.bf16.mxu0 %v1615
    %1971 = vmatpush2.bf16.msra.mxu0 %v1614
    %1972 = vmatprep.subr.bf16.mxu0 %v1613
    %1973 = vmatpush2.bf16.msra.mxu0 %v1612
    %1974 = vmatprep.subr.bf16.mxu0 %v1611
    %1975 = vmatpush2.bf16.msra.mxu0 %v1610
    %1976 = vmatprep.subr.bf16.mxu0 %v1609
    %1977 = vmatpush2.bf16.msra.mxu0 %v1608
    %1978 = vmatprep.subr.bf16.mxu0 %v1607
    %1979 = vmatpush2.bf16.msra.mxu0 %v1606
    %1980 = vmatprep.subr.bf16.mxu0 %v1605
    %1981 = vmatpush2.bf16.msra.mxu0 %v1604
    %1982 = vmatprep.subr.bf16.mxu0 %v1603
    %1983 = vmatpush2.bf16.msra.mxu0 %v1602
    %1984 = vmatprep.subr.bf16.mxu0 %v1601
    %1985 = vmatpush2.bf16.msra.mxu0 %v1600
    %1986 = vmatprep.mubr.bf16.mxu0 %v99
    %1987 = vmatmul.mubr.bf16.gmra.mxu0 %v98
    %v1988 = vpop.f32.mrf.mxu0
    %v1989 = vadd.f32 %v1948, %v1988
    %v1990 = vpop.f32.mrf.mxu0
    %v1991 = vadd.f32 %v1950, %v1990
    %v1992 = vpop.f32.mrf.mxu0
    %v1993 = vpop.f32.mrf.mxu0
    %1994 = vdwg.mxu0
    %1995 = vmatprep.subr.bf16.mxu0 %v1631
    %1996 = vmatpush1.bf16.msra.mxu0 %v1630
    %1997 = vmatprep.subr.bf16.mxu0 %v1629
    %1998 = vmatpush1.bf16.msra.mxu0 %v1628
    %1999 = vmatprep.subr.bf16.mxu0 %v1627
    %2000 = vmatpush1.bf16.msra.mxu0 %v1626
    %2001 = vmatprep.subr.bf16.mxu0 %v1625
    %2002 = vmatpush1.bf16.msra.mxu0 %v1624
    %2003 = vmatprep.subr.bf16.mxu0 %v1623
    %2004 = vmatpush1.bf16.msra.mxu0 %v1622
    %2005 = vmatprep.subr.bf16.mxu0 %v1621
    %2006 = vmatpush1.bf16.msra.mxu0 %v1620
    %2007 = vmatprep.subr.bf16.mxu0 %v1619
    %2008 = vmatpush1.bf16.msra.mxu0 %v1618
    %2009 = vmatprep.subr.bf16.mxu0 %v1617
    %2010 = vmatpush1.bf16.msra.mxu0 %v1616
    %2011 = vmatprep.subr.bf16.mxu0 %v1647
    %2012 = vmatpush2.bf16.msra.mxu0 %v1646
    %2013 = vmatprep.subr.bf16.mxu0 %v1645
    %2014 = vmatpush2.bf16.msra.mxu0 %v1644
    %2015 = vmatprep.subr.bf16.mxu0 %v1643
    %2016 = vmatpush2.bf16.msra.mxu0 %v1642
    %2017 = vmatprep.subr.bf16.mxu0 %v1641
    %2018 = vmatpush2.bf16.msra.mxu0 %v1640
    %2019 = vmatprep.subr.bf16.mxu0 %v1639
    %2020 = vmatpush2.bf16.msra.mxu0 %v1638
    %2021 = vmatprep.subr.bf16.mxu0 %v1637
    %2022 = vmatpush2.bf16.msra.mxu0 %v1636
    %2023 = vmatprep.subr.bf16.mxu0 %v1635
    %2024 = vmatpush2.bf16.msra.mxu0 %v1634
    %2025 = vmatprep.subr.bf16.mxu0 %v1633
    %2026 = vmatpush2.bf16.msra.mxu0 %v1632
    %2027 = vmatprep.mubr.bf16.mxu0 %v101
    %2028 = vmatmul.mubr.bf16.gmra.mxu0 %v100
    %v2029 = vpop.f32.mrf.mxu0
    %v2030 = vadd.f32 %v1989, %v2029
    %v2031 = vpop.f32.mrf.mxu0
    %v2032 = vadd.f32 %v1991, %v2031
    %v2033 = vpop.f32.mrf.mxu0
    %v2034 = vpop.f32.mrf.mxu0
    %2035 = vdwg.mxu0
    %2036 = vmatprep.subr.bf16.mxu0 %v1663
    %2037 = vmatpush1.bf16.msra.mxu0 %v1662
    %2038 = vmatprep.subr.bf16.mxu0 %v1661
    %2039 = vmatpush1.bf16.msra.mxu0 %v1660
    %2040 = vmatprep.subr.bf16.mxu0 %v1659
    %2041 = vmatpush1.bf16.msra.mxu0 %v1658
    %2042 = vmatprep.subr.bf16.mxu0 %v1657
    %2043 = vmatpush1.bf16.msra.mxu0 %v1656
    %2044 = vmatprep.subr.bf16.mxu0 %v1655
    %2045 = vmatpush1.bf16.msra.mxu0 %v1654
    %2046 = vmatprep.subr.bf16.mxu0 %v1653
    %2047 = vmatpush1.bf16.msra.mxu0 %v1652
    %2048 = vmatprep.subr.bf16.mxu0 %v1651
    %2049 = vmatpush1.bf16.msra.mxu0 %v1650
    %2050 = vmatprep.subr.bf16.mxu0 %v1649
    %2051 = vmatpush1.bf16.msra.mxu0 %v1648
    %2052 = vmatprep.subr.bf16.mxu0 %v1679
    %2053 = vmatpush2.bf16.msra.mxu0 %v1678
    %2054 = vmatprep.subr.bf16.mxu0 %v1677
    %2055 = vmatpush2.bf16.msra.mxu0 %v1676
    %2056 = vmatprep.subr.bf16.mxu0 %v1675
    %2057 = vmatpush2.bf16.msra.mxu0 %v1674
    %2058 = vmatprep.subr.bf16.mxu0 %v1673
    %2059 = vmatpush2.bf16.msra.mxu0 %v1672
    %2060 = vmatprep.subr.bf16.mxu0 %v1671
    %2061 = vmatpush2.bf16.msra.mxu0 %v1670
    %2062 = vmatprep.subr.bf16.mxu0 %v1669
    %2063 = vmatpush2.bf16.msra.mxu0 %v1668
    %2064 = vmatprep.subr.bf16.mxu0 %v1667
    %2065 = vmatpush2.bf16.msra.mxu0 %v1666
    %2066 = vmatprep.subr.bf16.mxu0 %v1665
    %2067 = vmatpush2.bf16.msra.mxu0 %v1664
    %2068 = vmatprep.mubr.bf16.mxu0 %v103
    %2069 = vmatmul.mubr.bf16.gmra.mxu0 %v102
    %v2070 = vpop.f32.mrf.mxu0
    %v2071 = vadd.f32 %v2030, %v2070
    %v2072 = vpop.f32.mrf.mxu0
    %v2073 = vadd.f32 %v2032, %v2072
    %v2074 = vpop.f32.mrf.mxu0
    %v2075 = vpop.f32.mrf.mxu0
    %2076 = vdwg.mxu0
    %2077 = vmatprep.subr.bf16.mxu0 %v1695
    %2078 = vmatpush1.bf16.msra.mxu0 %v1694
    %2079 = vmatprep.subr.bf16.mxu0 %v1693
    %2080 = vmatpush1.bf16.msra.mxu0 %v1692
    %2081 = vmatprep.subr.bf16.mxu0 %v1691
    %2082 = vmatpush1.bf16.msra.mxu0 %v1690
    %2083 = vmatprep.subr.bf16.mxu0 %v1689
    %2084 = vmatpush1.bf16.msra.mxu0 %v1688
    %2085 = vmatprep.subr.bf16.mxu0 %v1687
    %2086 = vmatpush1.bf16.msra.mxu0 %v1686
    %2087 = vmatprep.subr.bf16.mxu0 %v1685
    %2088 = vmatpush1.bf16.msra.mxu0 %v1684
    %2089 = vmatprep.subr.bf16.mxu0 %v1683
    %2090 = vmatpush1.bf16.msra.mxu0 %v1682
    %2091 = vmatprep.subr.bf16.mxu0 %v1681
    %2092 = vmatpush1.bf16.msra.mxu0 %v1680
    %2093 = vmatprep.subr.bf16.mxu0 0
    %2094 = vmatpush2.bf16.msra.mxu0 0
    %2095 = vmatprep.subr.bf16.mxu0 0
    %2096 = vmatpush2.bf16.msra.mxu0 0
    %2097 = vmatprep.subr.bf16.mxu0 0
    %2098 = vmatpush2.bf16.msra.mxu0 0
    %2099 = vmatprep.subr.bf16.mxu0 0
    %2100 = vmatpush2.bf16.msra.mxu0 0
    %2101 = vmatprep.subr.bf16.mxu0 0
    %2102 = vmatpush2.bf16.msra.mxu0 0
    %2103 = vmatprep.subr.bf16.mxu0 0
    %2104 = vmatpush2.bf16.msra.mxu0 0
    %2105 = vmatprep.subr.bf16.mxu0 0
    %2106 = vmatpush2.bf16.msra.mxu0 0
    %2107 = vmatprep.subr.bf16.mxu0 0
    %2108 = vmatpush2.bf16.msra.mxu0 0
    %2109 = vmatprep.mubr.bf16.mxu0 0
    %2110 = vmatmul.mubr.bf16.gmra.mxu0 %v104
    %v2111 = vpop.f32.mrf.mxu0
    %v2112 = vadd.f32 %v2071, %v2111
    %v2113 = vpop.f32.mrf.mxu0
    %v2114 = vadd.f32 %v2073, %v2113
    %v2115 = vpop.f32.mrf.mxu0
    %v2116 = vpop.f32.mrf.mxu0
    %2117 = vdwg.mxu0
    %v2118 = vld [vmem:[#allocation9] ss:$8 sm:$0x3]
    %v2120 = vlaneseq
    %v2121 = vshrl.u32 %v2120, 7
    %v2122 = vsub.s32 0, %v2121
    %v2123 = vrot.slane %v2118, %v2122
    %v2124 = vlaneseq
    %v2125 = vshrl.u32 %v2124, 7
    %v2126 = vsub.s32 1, %v2125
    %v2127 = vrot.slane %v2118, %v2126
    %v2130 = vadd.f32 %v2112, %v2123
    %v2131 = vadd.f32 %v2114, %v2127
    %vm2132 = vcmp.ge.f32.partialorder %v2130, 0.0
    %v2133 = vmul.f32 %v2130, 0.1
    %v2134 = vsel %vm2132, %v2130, %v2133
    %v2135 = vld [vmem:[#allocation9 + $0x1] ss:$0 sm:$0xff]
    %v2136 = vld [vmem:[#allocation9 + $0x2] ss:$0 sm:$0xff]
    %v2137 = vrot.slane %v2134, 4
    %v2138 = vadd.f32 %v2134, %v2137
    %v2139 = vrot.slane %v2138, 2
    %v2140 = vadd.f32 %v2138, %v2139
    %v2141 = vrot.slane %v2140, 1
    %v2142 = vadd.f32 %v2140, %v2141
    %v2143 = vrcp.pop 8.0
    %v2144 = vmul.f32 %v2142, %v2143
    %v2145 = vsub.f32 %v2134, %v2144
    %v2146 = vmul.f32 %v2145, %v2145
    %v2147 = vrot.slane %v2146, 4
    %v2148 = vadd.f32 %v2146, %v2147
    %v2149 = vrot.slane %v2148, 2
    %v2150 = vadd.f32 %v2148, %v2149
    %v2151 = vrot.slane %v2150, 1
    %v2152 = vadd.f32 %v2150, %v2151
    %v2153 = vmul.f32 %v2152, %v2143
    %v2154 = vadd.f32 %v2153, 1e-05
    %v2155 = vrsqrt.pop %v2154
    %v2156 = vmul.f32 %v2145, %v2155
    %v2157 = vmul.f32 %v2156, %v2135
    %v2158 = vadd.f32 %v2157, %v2136
    %v2159 = vld [vmem:[#allocation9 + $0x9] ss:$0 sm:$0xff]
    %v2160 = vld [vmem:[#allocation9 + $0xa] ss:$0 sm:$0xff]
    %v2161 = vrot.slane %v2131, 4
    %v2162 = vadd.f32 %v2131, %v2161
    %v2163 = vrot.slane %v2162, 2
    %v2164 = vadd.f32 %v2162, %v2163
    %v2165 = vrot.slane %v2164, 1
    %v2166 = vadd.f32 %v2164, %v2165
    %v2167 = vmul.f32 %v2166, %v2143
    %v2168 = vsub.f32 %v2131, %v2167
    %v2169 = vmul.f32 %v2168, %v2168
    %v2170 = vrot.slane %v2169, 4
    %v2171 = vadd.f32 %v2169, %v2170
    %v2172 = vrot.slane %v2171, 2
    %v2173 = vadd.f32 %v2171, %v2172
    %v2174 = vrot.slane %v2173, 1
    %v2175 = vadd.f32 %v2173, %v2174
    %v2176 = vmul.f32 %v2175, %v2143
    %v2177 = vadd.f32 %v2176, 1e-05
    %v2178 = vrsqrt.pop %v2177
    %v2179 = vmul.f32 %v2168, %v2178
    %v2180 = vmul.f32 %v2179, %v2159
    %v2181 = vadd.f32 %v2180, %v2160
    %v2182 = vld [vmem:[#allocation9 + $0x3] ss:$0 sm:$0xff]
    %v2183 = vld [vmem:[#allocation9 + $0x4] ss:$0 sm:$0xff]
    %v2184 = vmul.f32 %v2158, %v2182
    %2185 = vadd.xlane.f32.xlu0 %v2184
    %v2186 = vpop.xlane.xlu0 %2185
    %v2187 = vadd.f32 %v2186, %v2183
    %v2188 = vld [vmem:[#allocation9 + $0xb] ss:$0 sm:$0xff]
    %v2189 = vld [vmem:[#allocation9 + $0xc] ss:$0 sm:$0xff]
    %v2190 = vmul.f32 %v2181, %v2188
    %2191 = vadd.xlane.f32.xlu0 %v2190
    %v2192 = vpop.xlane.xlu0 %2191
    %v2193 = vadd.f32 %v2192, %v2189
    %vm2194 = vcmask 7168
    %2195 = vst.msk [vmem:[%s5] sm:$0xff] %vm2194, %v2187
    %v2196 = vtanh.pop %v2187
    %s2197 = scalar_lea.vmem %s5, 8
    %2198 = vst.msk [vmem:[%s2197] sm:$0xff] %vm2194, %v2196
    %s2199 = scalar_lea.vmem %s5, 16
    %2200 = vst.msk [vmem:[%s2199] sm:$0xff] %vm2194, %v2193
    %v2201 = vtanh.pop %v2193
    %s2202 = scalar_lea.vmem %s5, 24
    %2203 = vst.msk [vmem:[%s2202] sm:$0xff] %vm2194, %v2201
    // Predicated region
    $region42: #{tpu_custom_call.1} parent=1 // pred_check
      _
    $region43: #{tpu_custom_call.1} parent=1 // pred_check_branch
      %2205 = sbr.rel (0) target = $region45
    $region44: #{tpu_custom_call.1} parent=1 // pred_region
      _
    $region45: #{tpu_custom_call.1} parent=1 // pred_fallthru
      _
    // Predicated region
    $region46: #{tpu_custom_call.1} parent=1 // pred_check
      _
    $region47: #{tpu_custom_call.1} parent=1 // pred_check_branch
      %2207 = sbr.rel (0) target = $region49
    $region48: #{tpu_custom_call.1} parent=1 // pred_region
      _
    $region49: #{tpu_custom_call.1} parent=1 // pred_fallthru
      _
    %2208 = vsyncpa [#allocation3], 1
    %2209 = vsyncpa [#allocation5], 1
    %2210 = vsyncpa [#allocation8], 1

</llo_original>
